<compile_context>
chip_gen: v7x
topology: tpu7x:2x2x1
jax: 0.10.0
libtpu: 0.0.40
codegen_flags: <defaults>
</compile_context>

<pallas_src>
import functools
import math

import jax
import jax.numpy as jnp
import numpy as np
from jax.experimental import pallas as pl

# ------------------------------- config ------------------------------------
SEQ = 8             # target sequence length T
SRC = 8             # memory / source length (num_fields)
BATCH = 2
EMBED = 32
NUM_HEADS = 4
FFN = 64
NORMALIZE_BEFORE = False    # paper default: post-norm
LN_EPS = 1e-5               # torch.nn.LayerNorm default eps


def _mm(a, b_bf16):
    """MXU matmul: activation cast to bf16, weight already bf16, f32 accumulation."""
    return jnp.dot(a.astype(jnp.bfloat16), b_bf16,
                   preferred_element_type=jnp.float32)


def _mm_ref(a, b):
    """Reference-side matmul with the same bf16-in / f32-acc numerics."""
    return jnp.dot(a.astype(jnp.bfloat16), b.astype(jnp.bfloat16),
                   preferred_element_type=jnp.float32)


def _layer_norm(x, gamma, beta):
    mu = jnp.mean(x, axis=-1, keepdims=True)
    xc = x - mu
    var = jnp.mean(xc * xc, axis=-1, keepdims=True)
    return xc * jax.lax.rsqrt(var + LN_EPS) * gamma + beta


# -------------------------------- kernel ------------------------------------
def _decoder_layer_kernel(x_ref, mem_ref, mask_ref,
                          wq_ref, wkv_ref, wo_ref,
                          fc1w_ref, fc2w_ref, pe_ref,
                          out_ref, *, num_heads, normalize_before):
    b, t, e = x_ref.shape
    s = mem_ref.shape[1]
    ffn = fc1w_ref.shape[-1]
    nh = num_heads
    dh = e // nh

    # packed small params, rows:
    #   0: [bq | bo]   1: [bk | bv]   2: fc1b   3: [fc2b | pad]
    #   4: [ln1_g | ln1_b]   5: [ln2_g | ln2_b]
    pe = pe_ref[...]
    bq = pe[0:1, 0:e]
    bo = pe[0:1, e:2 * e]
    bkv = pe[1:2, 0:2 * e]
    fc1b = pe[2:3, 0:ffn]
    fc2b = pe[3:4, 0:e]
    ln1_g, ln1_b = pe[4:5, 0:e], pe[4:5, e:2 * e]
    ln2_g, ln2_b = pe[5:6, 0:e], pe[5:6, e:2 * e]

    residual = x_ref[...].reshape(b * t, e)     # (B*T, E) f32
    m2 = mem_ref[...].reshape(b * s, e)         # (B*S, E) f32
    mask = mask_ref[...]                        # (T, S) additive f32 (0 / -1e9)

    xin = _layer_norm(residual, ln1_g, ln1_b) if normalize_before else residual

    # Fused projections: one (B*T,E)x(E,E) for q (scale folded into wq/bq),
    # one (B*S,E)x(E,2E) for packed [k | v].
    q = _mm(xin, wq_ref[...]) + bq              # (B*T, E)
    kv = _mm(m2, wkv_ref[...]) + bkv            # (B*S, 2E)

    # Head split -> (nh*B, T/S, dh), head-major along the leading (untiled) axis.
    qh = jnp.concatenate(
        [q[:, h * dh:(h + 1) * dh].reshape(b, t, dh) for h in range(nh)], axis=0)
    kh = jnp.concatenate(
        [kv[:, h * dh:(h + 1) * dh].reshape(b, s, dh) for h in range(nh)], axis=0)
    vh = jnp.concatenate(
        [kv[:, e + h * dh:e + (h + 1) * dh].reshape(b, s, dh) for h in range(nh)],
        axis=0)

    # Single batched attention over all (head, batch) pairs.
    sc = jnp.einsum("ntd,nsd->nts",
                    qh.astype(jnp.bfloat16), kh.astype(jnp.bfloat16),
                    preferred_element_type=jnp.float32)       # (nh*B, T, S)
    sc = sc + mask[None, :, :]                                # one broadcast
    sc = sc - jnp.max(sc, axis=-1, keepdims=True)
    p = jnp.exp(sc)
    p = p * pl.reciprocal(jnp.sum(p, axis=-1, keepdims=True), approx=True)
    ctx = jnp.einsum("nts,nsd->ntd",
                     p.astype(jnp.bfloat16), vh.astype(jnp.bfloat16),
                     preferred_element_type=jnp.float32)      # (nh*B, T, dh)

    # Output projection: batched per-head matmul + single f32 accumulation
    # (mathematically identical to concat_h(ctx_h) @ Wo; maps to MRB accumulate
    # on v7x, 3 tiny VALU adds on v5e/v6e).
    ctx_r = ctx.reshape(nh, b * t, dh)                        # (nh, B*T, dh)
    attn_h = jnp.einsum("hxd,hde->hxe",
                        ctx_r.astype(jnp.bfloat16), wo_ref[...],
                        preferred_element_type=jnp.float32)   # (nh, B*T, E)
    attn = jnp.sum(attn_h, axis=0) + bo                       # (B*T, E)

    # dropout (eval mode) == identity
    y = residual + attn
    if not normalize_before:
        y = _layer_norm(y, ln1_g, ln1_b)

    res2 = y
    z = _layer_norm(y, ln2_g, ln2_b) if normalize_before else y
    h1 = jnp.maximum(_mm(z, fc1w_ref[...]) + fc1b, 0.0)       # ReLU activation_fn
    ff = _mm(h1, fc2w_ref[...]) + fc2b
    y = res2 + ff
    if not normalize_before:
        y = _layer_norm(y, ln2_g, ln2_b)

    out_ref[...] = y                                           # flat (B*T, E)


# -------------------------------- wrapper ------------------------------------
def decoder_layer(x, memory, params, attn_mask=None,
                  normalize_before=NORMALIZE_BEFORE):
    """x: (T, B, E) f32; memory: (S, B, E) f32; attn_mask: optional (T, S) bool
    with True == masked out. Returns (T, B, E) f32."""
    t, b, e = x.shape
    s = memory.shape[0]
    nh = NUM_HEADS
    dh = e // nh
    ffn = params["fc1w"].shape[-1]
    scale = 1.0 / math.sqrt(dh)

    xb = jnp.transpose(x, (1, 0, 2))        # (B, T, E) batch-first
    mb = jnp.transpose(memory, (1, 0, 2))   # (B, S, E)

    # bf16 weights (halves weight DMA, removes in-kernel weight casts).
    wq = (params["wq"] * scale).astype(jnp.bfloat16)          # scale folded in
    wkv = jnp.concatenate([params["wk"], params["wv"]],
                          axis=1).astype(jnp.bfloat16)        # (E, 2E)
    wo_r = params["wo"].reshape(nh, dh, e).astype(jnp.bfloat16)
    fc1w = params["fc1w"].astype(jnp.bfloat16)
    fc2w = params["fc2w"].astype(jnp.bfloat16)

    # packed small params -> single (6, max(2E, FFN)) f32 tile
    w = max(2 * e, ffn)

    def _row(*parts):
        r = jnp.concatenate(parts, axis=-1)
        return jnp.pad(r, ((0, 0), (0, w - r.shape[-1])))

    pe = jnp.concatenate([
        _row(params["bq"] * scale, params["bo"]),
        _row(params["bk"], params["bv"]),
        _row(params["fc1b"]),
        _row(params["fc2b"]),
        _row(params["ln1_g"], params["ln1_b"]),
        _row(params["ln2_g"], params["ln2_b"]),
    ], axis=0).astype(jnp.float32)

    if attn_mask is None:
        mask = jnp.zeros((t, s), jnp.float32)
    else:
        mask = jnp.where(attn_mask, -1e9, 0.0).astype(jnp.float32)

    kernel = functools.partial(_decoder_layer_kernel, num_heads=nh,
                               normalize_before=normalize_before)
    out = pl.pallas_call(
        kernel,
        out_shape=jax.ShapeDtypeStruct((b * t, e), jnp.float32),
    )(xb, mb, mask, wq, wkv, wo_r, fc1w, fc2w, pe)
    return jnp.transpose(out.reshape(b, t, e), (1, 0, 2))     # back to (T, B, E)


# ------------------------- deterministic params ------------------------------
def init_params(key):
    ks = jax.random.split(key, 16)

    def rnd(k, shape, scale=0.1):
        return scale * jax.random.normal(k, shape, jnp.float32)

    return dict(
        wq=rnd(ks[0], (EMBED, EMBED)), bq=rnd(ks[1], (1, EMBED)),
        wk=rnd(ks[2], (EMBED, EMBED)), bk=rnd(ks[3], (1, EMBED)),
        wv=rnd(ks[4], (EMBED, EMBED)), bv=rnd(ks[5], (1, EMBED)),
        wo=rnd(ks[6], (EMBED, EMBED)), bo=rnd(ks[7], (1, EMBED)),
        fc1w=rnd(ks[8], (EMBED, FFN)), fc1b=rnd(ks[9], (1, FFN)),
        fc2w=rnd(ks[10], (FFN, EMBED)), fc2b=rnd(ks[11], (1, EMBED)),
        ln1_g=1.0 + rnd(ks[12], (1, EMBED)), ln1_b=rnd(ks[13], (1, EMBED)),
        ln2_g=1.0 + rnd(ks[14], (1, EMBED)), ln2_b=rnd(ks[15], (1, EMBED)),
    )


# ------------------------------ pure-JAX reference ---------------------------
def reference(x, memory, params, attn_mask=None,
              normalize_before=NORMALIZE_BEFORE):
    t, b, e = x.shape
    s = memory.shape[0]
    nh = NUM_HEADS
    dh = e // nh
    scale = 1.0 / math.sqrt(dh)

    xb = jnp.transpose(x, (1, 0, 2))        # (B, T, E)
    mb = jnp.transpose(memory, (1, 0, 2))   # (B, S, E)

    residual = xb.reshape(b * t, e)
    xin = _layer_norm(residual, params["ln1_g"], params["ln1_b"]) \
        if normalize_before else residual

    q = (_mm_ref(xin, params["wq"]) + params["bq"]) * scale
    k = _mm_ref(mb.reshape(b * s, e), params["wk"]) + params["bk"]
    v = _mm_ref(mb.reshape(b * s, e), params["wv"]) + params["bv"]

    q4 = q.reshape(b, t, nh, dh).transpose(0, 2, 1, 3)   # (B, nh, T, dh)
    k4 = k.reshape(b, s, nh, dh).transpose(0, 2, 1, 3)
    v4 = v.reshape(b, s, nh, dh).transpose(0, 2, 1, 3)
    logits = jnp.einsum("bhtd,bhsd->bhts",
                        q4.astype(jnp.bfloat16), k4.astype(jnp.bfloat16),
                        preferred_element_type=jnp.float32)
    if attn_mask is not None:
        logits = logits + jnp.where(attn_mask, -1e9, 0.0)[None, None, :, :]
    p = jax.nn.softmax(logits, axis=-1)
    ctx = jnp.einsum("bhts,bhsd->bhtd",
                     p.astype(jnp.bfloat16), v4.astype(jnp.bfloat16),
                     preferred_element_type=jnp.float32)
    ctx = ctx.transpose(0, 2, 1, 3).reshape(b * t, e)
    attn = _mm_ref(ctx, params["wo"]) + params["bo"]

    y = residual + attn
    if not normalize_before:
        y = _layer_norm(y, params["ln1_g"], params["ln1_b"])
    res2 = y
    z = _layer_norm(y, params["ln2_g"], params["ln2_b"]) if normalize_before else y
    h1 = jnp.maximum(_mm_ref(z, params["fc1w"]) + params["fc1b"], 0.0)
    ff = _mm_ref(h1, params["fc2w"]) + params["fc2b"]
    y = res2 + ff
    if not normalize_before:
        y = _layer_norm(y, params["ln2_g"], params["ln2_b"])
    return jnp.transpose(y.reshape(b, t, e), (1, 0, 2))


if __name__ == "__main__":
    key = jax.random.PRNGKey(0)
    kx, km, kp = jax.random.split(key, 3)
    x = jax.random.normal(kx, (SEQ, BATCH, EMBED), jnp.float32)
    memory = jax.random.normal(km, (SRC, BATCH, EMBED), jnp.float32)
    params = init_params(kp)
    # boolean attn_mask, True == masked out (PyTorch convention); no fully-masked row.
    # (Note: fully-masked rows would give uniform attention here vs NaN in torch.)
    attn_mask = jnp.arange(SRC)[None, :] > (jnp.arange(SEQ)[:, None] + 4)

    out = decoder_layer(x, memory, params, attn_mask=attn_mask)
    out = jax.block_until_ready(out)

    ref = reference(x, memory, params, attn_mask=attn_mask)
    np.testing.assert_allclose(np.asarray(out), np.asarray(ref),
                               rtol=1e-2, atol=1e-2)
    assert out.shape == (SEQ, BATCH, EMBED)
    print("KERNEL_OK")
</pallas_src>

<mosaic_0001>
module attributes {stable_mosaic.version = 11 : i64} {
  func.func @_decoder_layer_kernel(%arg0: memref<2x8x32xf32, #tpu.memory_space<vmem>>, %arg1: memref<2x8x32xf32, #tpu.memory_space<vmem>>, %arg2: memref<8x8xf32, #tpu.memory_space<vmem>>, %arg3: memref<32x32xbf16, #tpu.memory_space<vmem>>, %arg4: memref<32x64xbf16, #tpu.memory_space<vmem>>, %arg5: memref<4x8x32xbf16, #tpu.memory_space<vmem>>, %arg6: memref<32x64xbf16, #tpu.memory_space<vmem>>, %arg7: memref<64x32xbf16, #tpu.memory_space<vmem>>, %arg8: memref<6x64xf32, #tpu.memory_space<vmem>>, %arg9: memref<16x32xf32, #tpu.memory_space<vmem>>) attributes {dimension_semantics = [], scalar_prefetch = 0 : i64, scratch_operands = 0 : i64, tpu.core_type = #tpu.core_type<tc>} {
    %c0 = arith.constant 0 : index
    %c0_0 = arith.constant 0 : index
    %0 = vector.load %arg8[%c0, %c0_0] : memref<6x64xf32, #tpu.memory_space<vmem>>, vector<6x64xf32>
    %1 = vector.extract_strided_slice %0 {offsets = [0, 0], sizes = [1, 32], strides = [1, 1]} : vector<6x64xf32> to vector<1x32xf32>
    %2 = vector.extract_strided_slice %0 {offsets = [0, 32], sizes = [1, 32], strides = [1, 1]} : vector<6x64xf32> to vector<1x32xf32>
    %3 = vector.extract_strided_slice %0 {offsets = [1, 0], sizes = [1, 64], strides = [1, 1]} : vector<6x64xf32> to vector<1x64xf32>
    %4 = vector.extract_strided_slice %0 {offsets = [2, 0], sizes = [1, 64], strides = [1, 1]} : vector<6x64xf32> to vector<1x64xf32>
    %5 = vector.extract_strided_slice %0 {offsets = [3, 0], sizes = [1, 32], strides = [1, 1]} : vector<6x64xf32> to vector<1x32xf32>
    %6 = vector.extract_strided_slice %0 {offsets = [4, 0], sizes = [1, 32], strides = [1, 1]} : vector<6x64xf32> to vector<1x32xf32>
    %7 = vector.extract_strided_slice %0 {offsets = [4, 32], sizes = [1, 32], strides = [1, 1]} : vector<6x64xf32> to vector<1x32xf32>
    %8 = vector.extract_strided_slice %0 {offsets = [5, 0], sizes = [1, 32], strides = [1, 1]} : vector<6x64xf32> to vector<1x32xf32>
    %9 = vector.extract_strided_slice %0 {offsets = [5, 32], sizes = [1, 32], strides = [1, 1]} : vector<6x64xf32> to vector<1x32xf32>
    %c0_1 = arith.constant 0 : index
    %c0_2 = arith.constant 0 : index
    %c0_3 = arith.constant 0 : index
    %10 = vector.load %arg0[%c0_1, %c0_2, %c0_3] : memref<2x8x32xf32, #tpu.memory_space<vmem>>, vector<2x8x32xf32>
    %11 = vector.shape_cast %10 : vector<2x8x32xf32> to vector<16x32xf32>
    %c0_4 = arith.constant 0 : index
    %c0_5 = arith.constant 0 : index
    %c0_6 = arith.constant 0 : index
    %12 = vector.load %arg1[%c0_4, %c0_5, %c0_6] : memref<2x8x32xf32, #tpu.memory_space<vmem>>, vector<2x8x32xf32>
    %13 = vector.shape_cast %12 : vector<2x8x32xf32> to vector<16x32xf32>
    %c0_7 = arith.constant 0 : index
    %c0_8 = arith.constant 0 : index
    %14 = vector.load %arg2[%c0_7, %c0_8] : memref<8x8xf32, #tpu.memory_space<vmem>>, vector<8x8xf32>
    %c0_9 = arith.constant 0 : index
    %c0_10 = arith.constant 0 : index
    %15 = vector.load %arg3[%c0_9, %c0_10] : memref<32x32xbf16, #tpu.memory_space<vmem>>, vector<32x32xbf16>
    %16 = arith.truncf %11 : vector<16x32xf32> to vector<16x32xbf16>
    %cst = arith.constant dense<0.000000e+00> : vector<16x32xf32>
    %17 = tpu.matmul %16, %15, %cst {dimension_numbers = #tpu.dot_dimension_numbers<[1], [0], [0], [1], [0, 0, 1, 1], [], []>} : vector<16x32xbf16>, vector<32x32xbf16>, vector<16x32xf32> -> vector<16x32xf32>
    %18 = vector.broadcast %1 : vector<1x32xf32> to vector<16x32xf32>
    %19 = arith.addf %17, %18 : vector<16x32xf32>
    %c0_11 = arith.constant 0 : index
    %c0_12 = arith.constant 0 : index
    %20 = vector.load %arg4[%c0_11, %c0_12] : memref<32x64xbf16, #tpu.memory_space<vmem>>, vector<32x64xbf16>
    %21 = arith.truncf %13 : vector<16x32xf32> to vector<16x32xbf16>
    %cst_13 = arith.constant dense<0.000000e+00> : vector<16x64xf32>
    %22 = tpu.matmul %21, %20, %cst_13 {dimension_numbers = #tpu.dot_dimension_numbers<[1], [0], [0], [1], [0, 0, 1, 1], [], []>} : vector<16x32xbf16>, vector<32x64xbf16>, vector<16x64xf32> -> vector<16x64xf32>
    %23 = vector.broadcast %3 : vector<1x64xf32> to vector<16x64xf32>
    %24 = arith.addf %22, %23 : vector<16x64xf32>
    %25 = vector.extract_strided_slice %19 {offsets = [0, 0], sizes = [16, 8], strides = [1, 1]} : vector<16x32xf32> to vector<16x8xf32>
    %26 = vector.shape_cast %25 : vector<16x8xf32> to vector<2x8x8xf32>
    %27 = vector.extract_strided_slice %19 {offsets = [0, 8], sizes = [16, 8], strides = [1, 1]} : vector<16x32xf32> to vector<16x8xf32>
    %28 = vector.shape_cast %27 : vector<16x8xf32> to vector<2x8x8xf32>
    %29 = vector.extract_strided_slice %19 {offsets = [0, 16], sizes = [16, 8], strides = [1, 1]} : vector<16x32xf32> to vector<16x8xf32>
    %30 = vector.shape_cast %29 : vector<16x8xf32> to vector<2x8x8xf32>
    %31 = vector.extract_strided_slice %19 {offsets = [0, 24], sizes = [16, 8], strides = [1, 1]} : vector<16x32xf32> to vector<16x8xf32>
    %32 = vector.shape_cast %31 : vector<16x8xf32> to vector<2x8x8xf32>
    %33 = tpu.concatenate %26, %28, %30, %32 in 0 : vector<2x8x8xf32>, vector<2x8x8xf32>, vector<2x8x8xf32>, vector<2x8x8xf32> -> vector<8x8x8xf32>
    %34 = vector.extract_strided_slice %24 {offsets = [0, 0], sizes = [16, 8], strides = [1, 1]} : vector<16x64xf32> to vector<16x8xf32>
    %35 = vector.shape_cast %34 : vector<16x8xf32> to vector<2x8x8xf32>
    %36 = vector.extract_strided_slice %24 {offsets = [0, 8], sizes = [16, 8], strides = [1, 1]} : vector<16x64xf32> to vector<16x8xf32>
    %37 = vector.shape_cast %36 : vector<16x8xf32> to vector<2x8x8xf32>
    %38 = vector.extract_strided_slice %24 {offsets = [0, 16], sizes = [16, 8], strides = [1, 1]} : vector<16x64xf32> to vector<16x8xf32>
    %39 = vector.shape_cast %38 : vector<16x8xf32> to vector<2x8x8xf32>
    %40 = vector.extract_strided_slice %24 {offsets = [0, 24], sizes = [16, 8], strides = [1, 1]} : vector<16x64xf32> to vector<16x8xf32>
    %41 = vector.shape_cast %40 : vector<16x8xf32> to vector<2x8x8xf32>
    %42 = tpu.concatenate %35, %37, %39, %41 in 0 : vector<2x8x8xf32>, vector<2x8x8xf32>, vector<2x8x8xf32>, vector<2x8x8xf32> -> vector<8x8x8xf32>
    %43 = vector.extract_strided_slice %24 {offsets = [0, 32], sizes = [16, 8], strides = [1, 1]} : vector<16x64xf32> to vector<16x8xf32>
    %44 = vector.shape_cast %43 : vector<16x8xf32> to vector<2x8x8xf32>
    %45 = vector.extract_strided_slice %24 {offsets = [0, 40], sizes = [16, 8], strides = [1, 1]} : vector<16x64xf32> to vector<16x8xf32>
    %46 = vector.shape_cast %45 : vector<16x8xf32> to vector<2x8x8xf32>
    %47 = vector.extract_strided_slice %24 {offsets = [0, 48], sizes = [16, 8], strides = [1, 1]} : vector<16x64xf32> to vector<16x8xf32>
    %48 = vector.shape_cast %47 : vector<16x8xf32> to vector<2x8x8xf32>
    %49 = vector.extract_strided_slice %24 {offsets = [0, 56], sizes = [16, 8], strides = [1, 1]} : vector<16x64xf32> to vector<16x8xf32>
    %50 = vector.shape_cast %49 : vector<16x8xf32> to vector<2x8x8xf32>
    %51 = tpu.concatenate %44, %46, %48, %50 in 0 : vector<2x8x8xf32>, vector<2x8x8xf32>, vector<2x8x8xf32>, vector<2x8x8xf32> -> vector<8x8x8xf32>
    %52 = arith.truncf %33 : vector<8x8x8xf32> to vector<8x8x8xbf16>
    %53 = arith.truncf %42 : vector<8x8x8xf32> to vector<8x8x8xbf16>
    "tpu.trace_start"() <{level = 10 : i32, message = "ntd,nsd->nts"}> : () -> ()
    %cst_14 = arith.constant dense<0.000000e+00> : vector<8x8x8xf32>
    %54 = tpu.matmul %52, %53, %cst_14 {dimension_numbers = #tpu.dot_dimension_numbers<[2], [2], [1], [1], [0, 0, 0, 1, 1, 1], [0], [0]>} : vector<8x8x8xbf16>, vector<8x8x8xbf16>, vector<8x8x8xf32> -> vector<8x8x8xf32>
    "tpu.trace_stop"() : () -> ()
    %55 = vector.shape_cast %14 : vector<8x8xf32> to vector<1x8x8xf32>
    %56 = vector.broadcast %55 : vector<1x8x8xf32> to vector<8x8x8xf32>
    %57 = arith.addf %54, %56 : vector<8x8x8xf32>
    %cst_15 = arith.constant dense<0xFF800000> : vector<8x8xf32>
    %58 = vector.multi_reduction <maximumf>, %57, %cst_15 [2] : vector<8x8x8xf32> to vector<8x8xf32>
    %59 = vector.shape_cast %58 : vector<8x8xf32> to vector<8x8x1xf32>
    %60 = vector.broadcast %59 : vector<8x8x1xf32> to vector<8x8x8xf32>
    %61 = arith.subf %57, %60 : vector<8x8x8xf32>
    %62 = math.exp %61 : vector<8x8x8xf32>
    %cst_16 = arith.constant dense<0.000000e+00> : vector<8x8xf32>
    %63 = vector.multi_reduction <add>, %62, %cst_16 [2] : vector<8x8x8xf32> to vector<8x8xf32>
    %64 = vector.shape_cast %63 : vector<8x8xf32> to vector<8x8x1xf32>
    %65 = tpu.reciprocal %64 {approx = true} : vector<8x8x1xf32> -> vector<8x8x1xf32>
    %66 = vector.broadcast %65 : vector<8x8x1xf32> to vector<8x8x8xf32>
    %67 = arith.mulf %62, %66 : vector<8x8x8xf32>
    %68 = arith.truncf %67 : vector<8x8x8xf32> to vector<8x8x8xbf16>
    %69 = arith.truncf %51 : vector<8x8x8xf32> to vector<8x8x8xbf16>
    "tpu.trace_start"() <{level = 10 : i32, message = "nts,nsd->ntd"}> : () -> ()
    %cst_17 = arith.constant dense<0.000000e+00> : vector<8x8x8xf32>
    %70 = tpu.matmul %68, %69, %cst_17 {dimension_numbers = #tpu.dot_dimension_numbers<[2], [1], [1], [2], [0, 0, 0, 1, 1, 2], [0], [0]>} : vector<8x8x8xbf16>, vector<8x8x8xbf16>, vector<8x8x8xf32> -> vector<8x8x8xf32>
    "tpu.trace_stop"() : () -> ()
    %71 = vector.shape_cast %70 : vector<8x8x8xf32> to vector<4x16x8xf32>
    %72 = arith.truncf %71 : vector<4x16x8xf32> to vector<4x16x8xbf16>
    %c0_18 = arith.constant 0 : index
    %c0_19 = arith.constant 0 : index
    %c0_20 = arith.constant 0 : index
    %73 = vector.load %arg5[%c0_18, %c0_19, %c0_20] : memref<4x8x32xbf16, #tpu.memory_space<vmem>>, vector<4x8x32xbf16>
    "tpu.trace_start"() <{level = 10 : i32, message = "hxd,hde->hxe"}> : () -> ()
    %cst_21 = arith.constant dense<0.000000e+00> : vector<4x16x32xf32>
    %74 = tpu.matmul %72, %73, %cst_21 {dimension_numbers = #tpu.dot_dimension_numbers<[2], [1], [1], [2], [0, 0, 0, 1, 1, 2], [0], [0]>} : vector<4x16x8xbf16>, vector<4x8x32xbf16>, vector<4x16x32xf32> -> vector<4x16x32xf32>
    "tpu.trace_stop"() : () -> ()
    %cst_22 = arith.constant dense<0.000000e+00> : vector<16x32xf32>
    %75 = vector.multi_reduction <add>, %74, %cst_22 [0] : vector<4x16x32xf32> to vector<16x32xf32>
    %76 = vector.broadcast %2 : vector<1x32xf32> to vector<16x32xf32>
    %77 = arith.addf %75, %76 : vector<16x32xf32>
    %78 = arith.addf %11, %77 : vector<16x32xf32>
    %cst_23 = arith.constant dense<0.000000e+00> : vector<16xf32>
    %79 = vector.multi_reduction <add>, %78, %cst_23 [1] : vector<16x32xf32> to vector<16xf32>
    %80 = vector.shape_cast %79 : vector<16xf32> to vector<16x1xf32>
    %cst_24 = arith.constant 3.200000e+01 : f32
    %81 = vector.broadcast %cst_24 : f32 to vector<16x1xf32>
    %82 = arith.divf %80, %81 : vector<16x1xf32>
    %83 = vector.broadcast %82 : vector<16x1xf32> to vector<16x32xf32>
    %84 = arith.subf %78, %83 : vector<16x32xf32>
    %85 = arith.mulf %84, %84 : vector<16x32xf32>
    %cst_25 = arith.constant dense<0.000000e+00> : vector<16xf32>
    %86 = vector.multi_reduction <add>, %85, %cst_25 [1] : vector<16x32xf32> to vector<16xf32>
    %87 = vector.shape_cast %86 : vector<16xf32> to vector<16x1xf32>
    %cst_26 = arith.constant 3.200000e+01 : f32
    %88 = vector.broadcast %cst_26 : f32 to vector<16x1xf32>
    %89 = arith.divf %87, %88 : vector<16x1xf32>
    %cst_27 = arith.constant 9.99999974E-6 : f32
    %90 = vector.broadcast %cst_27 : f32 to vector<16x1xf32>
    %91 = arith.addf %89, %90 : vector<16x1xf32>
    %92 = math.rsqrt %91 : vector<16x1xf32>
    %93 = vector.broadcast %92 : vector<16x1xf32> to vector<16x32xf32>
    %94 = arith.mulf %84, %93 : vector<16x32xf32>
    %95 = vector.broadcast %6 : vector<1x32xf32> to vector<16x32xf32>
    %96 = arith.mulf %94, %95 : vector<16x32xf32>
    %97 = vector.broadcast %7 : vector<1x32xf32> to vector<16x32xf32>
    %98 = arith.addf %96, %97 : vector<16x32xf32>
    %c0_28 = arith.constant 0 : index
    %c0_29 = arith.constant 0 : index
    %99 = vector.load %arg6[%c0_28, %c0_29] : memref<32x64xbf16, #tpu.memory_space<vmem>>, vector<32x64xbf16>
    %100 = arith.truncf %98 : vector<16x32xf32> to vector<16x32xbf16>
    %cst_30 = arith.constant dense<0.000000e+00> : vector<16x64xf32>
    %101 = tpu.matmul %100, %99, %cst_30 {dimension_numbers = #tpu.dot_dimension_numbers<[1], [0], [0], [1], [0, 0, 1, 1], [], []>} : vector<16x32xbf16>, vector<32x64xbf16>, vector<16x64xf32> -> vector<16x64xf32>
    %102 = vector.broadcast %4 : vector<1x64xf32> to vector<16x64xf32>
    %103 = arith.addf %101, %102 : vector<16x64xf32>
    %cst_31 = arith.constant 0.000000e+00 : f32
    %104 = vector.broadcast %cst_31 : f32 to vector<16x64xf32>
    %105 = arith.maximumf %103, %104 : vector<16x64xf32>
    %c0_32 = arith.constant 0 : index
    %c0_33 = arith.constant 0 : index
    %106 = vector.load %arg7[%c0_32, %c0_33] : memref<64x32xbf16, #tpu.memory_space<vmem>>, vector<64x32xbf16>
    %107 = arith.truncf %105 : vector<16x64xf32> to vector<16x64xbf16>
    %cst_34 = arith.constant dense<0.000000e+00> : vector<16x32xf32>
    %108 = tpu.matmul %107, %106, %cst_34 {dimension_numbers = #tpu.dot_dimension_numbers<[1], [0], [0], [1], [0, 0, 1, 1], [], []>} : vector<16x64xbf16>, vector<64x32xbf16>, vector<16x32xf32> -> vector<16x32xf32>
    %109 = vector.broadcast %5 : vector<1x32xf32> to vector<16x32xf32>
    %110 = arith.addf %108, %109 : vector<16x32xf32>
    %111 = arith.addf %98, %110 : vector<16x32xf32>
    %cst_35 = arith.constant dense<0.000000e+00> : vector<16xf32>
    %112 = vector.multi_reduction <add>, %111, %cst_35 [1] : vector<16x32xf32> to vector<16xf32>
    %113 = vector.shape_cast %112 : vector<16xf32> to vector<16x1xf32>
    %cst_36 = arith.constant 3.200000e+01 : f32
    %114 = vector.broadcast %cst_36 : f32 to vector<16x1xf32>
    %115 = arith.divf %113, %114 : vector<16x1xf32>
    %116 = vector.broadcast %115 : vector<16x1xf32> to vector<16x32xf32>
    %117 = arith.subf %111, %116 : vector<16x32xf32>
    %118 = arith.mulf %117, %117 : vector<16x32xf32>
    %cst_37 = arith.constant dense<0.000000e+00> : vector<16xf32>
    %119 = vector.multi_reduction <add>, %118, %cst_37 [1] : vector<16x32xf32> to vector<16xf32>
    %120 = vector.shape_cast %119 : vector<16xf32> to vector<16x1xf32>
    %cst_38 = arith.constant 3.200000e+01 : f32
    %121 = vector.broadcast %cst_38 : f32 to vector<16x1xf32>
    %122 = arith.divf %120, %121 : vector<16x1xf32>
    %cst_39 = arith.constant 9.99999974E-6 : f32
    %123 = vector.broadcast %cst_39 : f32 to vector<16x1xf32>
    %124 = arith.addf %122, %123 : vector<16x1xf32>
    %125 = math.rsqrt %124 : vector<16x1xf32>
    %126 = vector.broadcast %125 : vector<16x1xf32> to vector<16x32xf32>
    %127 = arith.mulf %117, %126 : vector<16x32xf32>
    %128 = vector.broadcast %8 : vector<1x32xf32> to vector<16x32xf32>
    %129 = arith.mulf %127, %128 : vector<16x32xf32>
    %130 = vector.broadcast %9 : vector<1x32xf32> to vector<16x32xf32>
    %131 = arith.addf %129, %130 : vector<16x32xf32>
    %c0_40 = arith.constant 0 : index
    %c0_41 = arith.constant 0 : index
    %132 = vector.load %arg9[%c0_40, %c0_41] : memref<16x32xf32, #tpu.memory_space<vmem>>, vector<16x32xf32>
    tpu.vector_store %arg9[%c0_40, %c0_41], %131 {strides = array<i32>} : memref<16x32xf32, #tpu.memory_space<vmem>>, vector<16x32xf32>,
    return
  }
}

</mosaic_0001>

<llo_original>
// kernel: tpu_custom_call.1
$region0: #{tpu_custom_call.1}
  #allocation0 [shape = 'u32[]', space=smem, size = 0x4, offset = 0x4, fixed_abs, tag = 'smem constant byte address 0x4 - core index']
  #allocation1 [shape = 'u32[144,128]{1,0:T(1,128)}', space=vmem, size = 0x12000, scoped, tag = 'internal scratch']
  %s0 = inlined_call_operand.vmem [shape: f32[2,8,32], index: 0, kind: input, shape index: {}]
  %s1 = inlined_call_operand.vmem [shape: f32[2,8,32], index: 1, kind: input, shape index: {}]
  %s2 = inlined_call_operand.hbm [shape: f32[8,8], index: 2, kind: input, shape index: {}]
  %s3 = inlined_call_operand.vmem [shape: bf16[32,32], index: 3, kind: input, shape index: {}]
  %s4 = inlined_call_operand.hbm [shape: bf16[32,64], index: 4, kind: input, shape index: {}]
  %s5 = inlined_call_operand.hbm [shape: bf16[4,8,32], index: 5, kind: input, shape index: {}]
  %s6 = inlined_call_operand.hbm [shape: bf16[32,64], index: 6, kind: input, shape index: {}]
  %s7 = inlined_call_operand.vmem [shape: bf16[64,32], index: 7, kind: input, shape index: {}]
  %s8 = inlined_call_operand.vmem [shape: f32[6,64], index: 8, kind: input, shape index: {}]
  %s9 = inlined_call_operand.hbm [shape: f32[16,32], index: 9, kind: output, shape index: {}]
  %s10 = sld [smem:[#allocation0]]
  $region62: #{tpu_custom_call.1} parent=0
    _
  %s12 = ssub.s32 1, %s10
  %s13 = scalar_select 0, %s12, %s10
  $region1: #{tpu_custom_call.1} parent=0
    #allocation2 [shape = 'u8[4096]{0}', space=vmem, size = 0x1000, scoped, tag = 'input window, operand 2, single buffered']
    #allocation3 [shape = 's32[1]{0}', space=sflag, size = 0x4, scoped, tag = 'scoped memory for tpu_custom_call.1']
    #allocation4 [shape = 's32[1]{0}', space=sflag, size = 0x4, scoped, tag = 'scoped memory for tpu_custom_call.1']
    #allocation5 [shape = 'u8[8192]{0}', space=vmem, size = 0x2000, scoped, tag = 'input window, operand 4, single buffered']
    #allocation6 [shape = 's32[1]{0}', space=sflag, size = 0x4, scoped, tag = 'scoped memory for tpu_custom_call.1']
    #allocation7 [shape = 'u8[8192]{0}', space=vmem, size = 0x2000, scoped, tag = 'input window, operand 5, single buffered']
    #allocation8 [shape = 'u8[8192]{0}', space=vmem, size = 0x2000, scoped, tag = 'input window, operand 6, single buffered']
    #allocation9 [shape = 's32[1]{0}', space=sflag, size = 0x4, scoped, tag = 'scoped memory for tpu_custom_call.1']
    #allocation10 [shape = 'u8[8192]{0}', space=vmem, size = 0x2000, scoped, tag = 'output window, operand 0, single buffered']
    %14 = vsyncpa [#allocation3], 0
    %15 = vsyncpa [#allocation6], 0
    %16 = vsyncpa [#allocation9], 0
    %17 = vsyncpa [#allocation4], 0
    // Predicated region
    $region2: #{tpu_custom_call.1} parent=1 // pred_check
      _
    $region3: #{tpu_custom_call.1} parent=1 // pred_check_branch
      %19 = sbr.rel (0) target = $region5
    $region4: #{tpu_custom_call.1} parent=1 // pred_region
      _
    $region5: #{tpu_custom_call.1} parent=1 // pred_fallthru
      _
    // Predicated region
    $region6: #{tpu_custom_call.1} parent=1 // pred_check
      _
    $region7: #{tpu_custom_call.1} parent=1 // pred_check_branch
      %21 = sbr.rel (0) target = $region9
    $region8: #{tpu_custom_call.1} parent=1 // pred_region
      _
    $region9: #{tpu_custom_call.1} parent=1 // pred_fallthru
      _
    // Predicated region
    $region10: #{tpu_custom_call.1} parent=1 // pred_check
      _
    $region11: #{tpu_custom_call.1} parent=1 // pred_check_branch
      %23 = sbr.rel (0) target = $region13
    $region12: #{tpu_custom_call.1} parent=1 // pred_region
      %s25 = ssub.s32 128, 128
      %26 = vsyncadd [#allocation3], %s25
      %s28 = sshll.u32 [#allocation2], 4
      %s29 = int_to_ptr.vmem [resolvable:$true] %s28
      %31 = dma.hbm_to_vmem [thread:$0]  %s2, 128, %s29, [#allocation3]
    $region13: #{tpu_custom_call.1} parent=1 // pred_fallthru
      _
    // Predicated region
    $region14: #{tpu_custom_call.1} parent=1 // pred_check
      _
    $region15: #{tpu_custom_call.1} parent=1 // pred_check_branch
      %33 = sbr.rel (0) target = $region17
    $region16: #{tpu_custom_call.1} parent=1 // pred_region
      _
    $region17: #{tpu_custom_call.1} parent=1 // pred_fallthru
      _
    // Predicated region
    $region18: #{tpu_custom_call.1} parent=1 // pred_check
      _
    $region19: #{tpu_custom_call.1} parent=1 // pred_check_branch
      %35 = sbr.rel (0) target = $region21
    $region20: #{tpu_custom_call.1} parent=1 // pred_region
      %s37 = ssub.s32 256, 256
      %38 = vsyncadd [#allocation6], %s37
      %s39 = sshll.u32 [#allocation5], 4
      %s40 = int_to_ptr.vmem [resolvable:$true] %s39
      %45 = dma.hbm_to_vmem [thread:$0]  %s4, 256, %s40, [#allocation6], 64, 64, 4
    $region21: #{tpu_custom_call.1} parent=1 // pred_fallthru
      _
    // Predicated region
    $region22: #{tpu_custom_call.1} parent=1 // pred_check
      _
    $region23: #{tpu_custom_call.1} parent=1 // pred_check_branch
      %47 = sbr.rel (0) target = $region25
    $region24: #{tpu_custom_call.1} parent=1 // pred_region
      %s49 = ssub.s32 256, 256
      %50 = vsyncadd [#allocation6], %s49
      %s51 = sshll.u32 [#allocation7], 4
      %s52 = int_to_ptr.vmem [resolvable:$true] %s51
      %57 = dma.hbm_to_vmem [thread:$0]  %s5, 256, %s52, [#allocation6], 64, 64, 4
    $region25: #{tpu_custom_call.1} parent=1 // pred_fallthru
      _
    // Predicated region
    $region26: #{tpu_custom_call.1} parent=1 // pred_check
      _
    $region27: #{tpu_custom_call.1} parent=1 // pred_check_branch
      %59 = sbr.rel (0) target = $region29
    $region28: #{tpu_custom_call.1} parent=1 // pred_region
      %s61 = ssub.s32 256, 256
      %62 = vsyncadd [#allocation9], %s61
      %s63 = sshll.u32 [#allocation8], 4
      %s64 = int_to_ptr.vmem [resolvable:$true] %s63
      %69 = dma.hbm_to_vmem [thread:$0]  %s6, 256, %s64, [#allocation9], 64, 64, 4
    $region29: #{tpu_custom_call.1} parent=1 // pred_fallthru
      _
    // Predicated region
    $region30: #{tpu_custom_call.1} parent=1 // pred_check
      _
    $region31: #{tpu_custom_call.1} parent=1 // pred_check_branch
      %71 = sbr.rel (0) target = $region33
    $region32: #{tpu_custom_call.1} parent=1 // pred_region
      _
    $region33: #{tpu_custom_call.1} parent=1 // pred_fallthru
      _
    // Predicated region
    $region34: #{tpu_custom_call.1} parent=1 // pred_check
      _
    $region35: #{tpu_custom_call.1} parent=1 // pred_check_branch
      %73 = sbr.rel (0) target = $region37
    $region36: #{tpu_custom_call.1} parent=1 // pred_region
      _
    $region37: #{tpu_custom_call.1} parent=1 // pred_fallthru
      _
    // Predicated region
    $region38: #{tpu_custom_call.1} parent=1 // pred_check
      _
    $region39: #{tpu_custom_call.1} parent=1 // pred_check_branch
      %75 = sbr.rel (0) target = $region41
    $region40: #{tpu_custom_call.1} parent=1 // pred_region
      %76 = dma.done [#allocation3], 128
    $region41: #{tpu_custom_call.1} parent=1 // pred_fallthru
      _
    // Predicated region
    $region42: #{tpu_custom_call.1} parent=1 // pred_check
      _
    $region43: #{tpu_custom_call.1} parent=1 // pred_check_branch
      %78 = sbr.rel (0) target = $region45
    $region44: #{tpu_custom_call.1} parent=1 // pred_region
      %79 = dma.done [#allocation6], 256
    $region45: #{tpu_custom_call.1} parent=1 // pred_fallthru
      _
    // Predicated region
    $region46: #{tpu_custom_call.1} parent=1 // pred_check
      _
    $region47: #{tpu_custom_call.1} parent=1 // pred_check_branch
      %81 = sbr.rel (0) target = $region49
    $region48: #{tpu_custom_call.1} parent=1 // pred_region
      %82 = dma.done [#allocation6], 256
    $region49: #{tpu_custom_call.1} parent=1 // pred_fallthru
      _
    // Predicated region
    $region50: #{tpu_custom_call.1} parent=1 // pred_check
      _
    $region51: #{tpu_custom_call.1} parent=1 // pred_check_branch
      %84 = sbr.rel (0) target = $region53
    $region52: #{tpu_custom_call.1} parent=1 // pred_region
      %85 = dma.done [#allocation9], 256
    $region53: #{tpu_custom_call.1} parent=1 // pred_fallthru
      _
    %v87 = vld [vmem:[%s8] sm:$0x3f]
    %v88 = vld [vmem:[%s0] sm:$0xff]
    %v89 = vld [vmem:[%s0 + $0x8] sm:$0xff]
    %v90 = vld [vmem:[%s1] sm:$0xff]
    %v91 = vld [vmem:[%s1 + $0x8] sm:$0xff]
    %v92 = vld [vmem:[#allocation2] sm:$0xff]
    %v93 = vld [vmem:[%s3] sm:$0xf]
    %v94 = vld [vmem:[%s3 + $0x4] sm:$0xf]
    %v95 = vld [vmem:[%s3 + $0x8] sm:$0xf]
    %v96 = vld [vmem:[%s3 + $0xc] sm:$0xf]
    %v97 = vpack.c.bf16 %v89, %v88
    %v98 = vlaneseq
    %v99 = vshrl.u32 %v98, 7
    %v100 = vsub.s32 0, %v99
    %v101 = vrot.slane %v87, %v100
    %v106 = vunpack.c.l.b16 %v93
    %v107 = vunpack.c.l.b16 %v94
    %v108 = vunpack.c.l.b16 %v95
    %v109 = vunpack.c.l.b16 %v96
    %v110 = vpack.c.b16 %v107, %v106
    %v111 = vpack.c.b16 %v109, %v108
    %vm114 = vcmask 261120
    %v116 = vsel %vm114, %v97, 0
    %118 = vmatprep.subr.bf16.mxu0 0
    %119 = vmatpush1.bf16.msra.mxu0 %v110
    %120 = vmatprep.subr.bf16.mxu0 0
    %121 = vmatpush1.bf16.msra.mxu0 %v111
    %122 = vmatprep.subr.bf16.mxu0 0
    %123 = vmatpush1.bf16.msra.mxu0 0
    %124 = vmatprep.subr.bf16.mxu0 0
    %125 = vmatpush1.bf16.msra.mxu0 0
    %126 = vmatprep.subr.bf16.mxu0 0
    %127 = vmatpush1.bf16.msra.mxu0 0
    %128 = vmatprep.subr.bf16.mxu0 0
    %129 = vmatpush1.bf16.msra.mxu0 0
    %130 = vmatprep.subr.bf16.mxu0 0
    %131 = vmatpush1.bf16.msra.mxu0 0
    %132 = vmatprep.subr.bf16.mxu0 0
    %133 = vmatpush1.bf16.msra.mxu0 0
    %134 = vmatprep.subr.bf16.mxu0 0
    %135 = vmatpush1.bf16.msra.mxu0 0
    %136 = vmatprep.subr.bf16.mxu0 0
    %137 = vmatpush1.bf16.msra.mxu0 0
    %138 = vmatprep.subr.bf16.mxu0 0
    %139 = vmatpush1.bf16.msra.mxu0 0
    %140 = vmatprep.subr.bf16.mxu0 0
    %141 = vmatpush1.bf16.msra.mxu0 0
    %142 = vmatprep.subr.bf16.mxu0 0
    %143 = vmatpush1.bf16.msra.mxu0 0
    %144 = vmatprep.subr.bf16.mxu0 0
    %145 = vmatpush1.bf16.msra.mxu0 0
    %146 = vmatprep.subr.bf16.mxu0 0
    %147 = vmatpush1.bf16.msra.mxu0 0
    %148 = vmatprep.subr.bf16.mxu0 0
    %149 = vmatpush1.bf16.msra.mxu0 0
    %150 = vmatprep.mubr.bf16.mxu0 0
    %151 = vmatmul.mubr.bf16.gmra.mrb[0].mxu0 %v116
    %v152 = vpop.f32.mrb[0].mxu0
    %v153 = vadd.f32 %v101, %v152
    %v154 = vpop.f32.mrb[0].mxu0
    %v155 = vpop.f32.mrb[0].mxu0
    %v156 = vadd.f32 %v101, %v155
    %v157 = vpop.f32.mrb[0].mxu0
    %158 = vdwg.mxu0
    %v159 = vld [vmem:[#allocation5] sm:$0xf]
    %v160 = vld [vmem:[#allocation5 + $0x4] sm:$0xf]
    %v161 = vld [vmem:[#allocation5 + $0x8] sm:$0xf]
    %v162 = vld [vmem:[#allocation5 + $0xc] sm:$0xf]
    %v163 = vpack.c.bf16 %v91, %v90
    %v164 = vlaneseq
    %v165 = vshrl.u32 %v164, 7
    %v166 = vsub.s32 1, %v165
    %v167 = vrot.slane %v87, %v166
    %v172 = vunpack.c.l.b16 %v159
    %v173 = vunpack.c.l.b16 %v160
    %v174 = vunpack.c.l.b16 %v161
    %v175 = vunpack.c.l.b16 %v162
    %v176 = vpack.c.b16 %v173, %v172
    %v177 = vpack.c.b16 %v175, %v174
    %v181 = vsel %vm114, %v163, 0
    %183 = vmatprep.subr.bf16.mxu0 0
    %184 = vmatpush1.bf16.msra.mxu0 %v176
    %185 = vmatprep.subr.bf16.mxu0 0
    %186 = vmatpush1.bf16.msra.mxu0 %v177
    %187 = vmatprep.subr.bf16.mxu0 0
    %188 = vmatpush1.bf16.msra.mxu0 0
    %189 = vmatprep.subr.bf16.mxu0 0
    %190 = vmatpush1.bf16.msra.mxu0 0
    %191 = vmatprep.subr.bf16.mxu0 0
    %192 = vmatpush1.bf16.msra.mxu0 0
    %193 = vmatprep.subr.bf16.mxu0 0
    %194 = vmatpush1.bf16.msra.mxu0 0
    %195 = vmatprep.subr.bf16.mxu0 0
    %196 = vmatpush1.bf16.msra.mxu0 0
    %197 = vmatprep.subr.bf16.mxu0 0
    %198 = vmatpush1.bf16.msra.mxu0 0
    %199 = vmatprep.subr.bf16.mxu0 0
    %200 = vmatpush1.bf16.msra.mxu0 0
    %201 = vmatprep.subr.bf16.mxu0 0
    %202 = vmatpush1.bf16.msra.mxu0 0
    %203 = vmatprep.subr.bf16.mxu0 0
    %204 = vmatpush1.bf16.msra.mxu0 0
    %205 = vmatprep.subr.bf16.mxu0 0
    %206 = vmatpush1.bf16.msra.mxu0 0
    %207 = vmatprep.subr.bf16.mxu0 0
    %208 = vmatpush1.bf16.msra.mxu0 0
    %209 = vmatprep.subr.bf16.mxu0 0
    %210 = vmatpush1.bf16.msra.mxu0 0
    %211 = vmatprep.subr.bf16.mxu0 0
    %212 = vmatpush1.bf16.msra.mxu0 0
    %213 = vmatprep.subr.bf16.mxu0 0
    %214 = vmatpush1.bf16.msra.mxu0 0
    %215 = vmatprep.mubr.bf16.mxu0 0
    %216 = vmatmul.mubr.bf16.gmra.mrb[0].mxu0 %v181
    %v217 = vpop.f32.mrb[0].mxu0
    %v218 = vadd.f32 %v167, %v217
    %v219 = vpop.f32.mrb[0].mxu0
    %v220 = vpop.f32.mrb[0].mxu0
    %v221 = vadd.f32 %v167, %v220
    %v222 = vpop.f32.mrb[0].mxu0
    %223 = vdwg.mxu0
    %226 = vrot.lane.b32.xlu0 %v153, 120
    %v227 = vpop.permute.xlu0 %226
    %228 = vrot.lane.b32.xlu0 %v156, 120
    %v229 = vpop.permute.xlu0 %228
    %232 = vrot.lane.b32.xlu0 %v153, 112
    %v233 = vpop.permute.xlu0 %232
    %234 = vrot.lane.b32.xlu0 %v156, 112
    %v235 = vpop.permute.xlu0 %234
    %238 = vrot.lane.b32.xlu0 %v153, 104
    %v239 = vpop.permute.xlu0 %238
    %240 = vrot.lane.b32.xlu0 %v156, 104
    %v241 = vpop.permute.xlu0 %240
    %246 = vrot.lane.b32.xlu0 %v218, 120
    %v247 = vpop.permute.xlu0 %246
    %248 = vrot.lane.b32.xlu0 %v221, 120
    %v249 = vpop.permute.xlu0 %248
    %252 = vrot.lane.b32.xlu0 %v218, 112
    %v253 = vpop.permute.xlu0 %252
    %254 = vrot.lane.b32.xlu0 %v221, 112
    %v255 = vpop.permute.xlu0 %254
    %258 = vrot.lane.b32.xlu0 %v218, 104
    %v259 = vpop.permute.xlu0 %258
    %260 = vrot.lane.b32.xlu0 %v221, 104
    %v261 = vpop.permute.xlu0 %260
    %v264 = vpack.c.bf16 %v153, %v153
    %v265 = vpack.c.bf16 %v156, %v156
    %v266 = vpack.c.bf16 %v227, %v227
    %v267 = vpack.c.bf16 %v229, %v229
    %v268 = vpack.c.bf16 %v233, %v233
    %v269 = vpack.c.bf16 %v235, %v235
    %v270 = vpack.c.bf16 %v239, %v239
    %v271 = vpack.c.bf16 %v241, %v241
    %v272 = vpack.c.bf16 %v218, %v218
    %v273 = vpack.c.bf16 %v221, %v221
    %v274 = vpack.c.bf16 %v247, %v247
    %v275 = vpack.c.bf16 %v249, %v249
    %v276 = vpack.c.bf16 %v253, %v253
    %v277 = vpack.c.bf16 %v255, %v255
    %v278 = vpack.c.bf16 %v259, %v259
    %v279 = vpack.c.bf16 %v261, %v261
    %vm280 = vcmask 64512
    %v282 = vsel %vm280, %v264, 0
    %v285 = vsel %vm280, %v272, 0
    %287 = vmatprep.subr.bf16.mxu0 0
    %288 = vmatpush1.bf16.xpose.msra.mxu0 %v285
    %289 = vmatprep.subr.bf16.mxu0 0
    %290 = vmatpush1.bf16.xpose.msra.mxu0 0
    %291 = vmatprep.subr.bf16.mxu0 0
    %292 = vmatpush1.bf16.xpose.msra.mxu0 0
    %293 = vmatprep.subr.bf16.mxu0 0
    %294 = vmatpush1.bf16.xpose.msra.mxu0 0
    %295 = vmatprep.subr.bf16.mxu0 0
    %296 = vmatpush1.bf16.xpose.msra.mxu0 0
    %297 = vmatprep.subr.bf16.mxu0 0
    %298 = vmatpush1.bf16.xpose.msra.mxu0 0
    %299 = vmatprep.subr.bf16.mxu0 0
    %300 = vmatpush1.bf16.xpose.msra.mxu0 0
    %301 = vmatprep.subr.bf16.mxu0 0
    %302 = vmatpush1.bf16.xpose.msra.mxu0 0
    %303 = vmatprep.subr.bf16.mxu0 0
    %304 = vmatpush1.bf16.xpose.msra.mxu0 0
    %305 = vmatprep.subr.bf16.mxu0 0
    %306 = vmatpush1.bf16.xpose.msra.mxu0 0
    %307 = vmatprep.subr.bf16.mxu0 0
    %308 = vmatpush1.bf16.xpose.msra.mxu0 0
    %309 = vmatprep.subr.bf16.mxu0 0
    %310 = vmatpush1.bf16.xpose.msra.mxu0 0
    %311 = vmatprep.subr.bf16.mxu0 0
    %312 = vmatpush1.bf16.xpose.msra.mxu0 0
    %313 = vmatprep.subr.bf16.mxu0 0
    %314 = vmatpush1.bf16.xpose.msra.mxu0 0
    %315 = vmatprep.subr.bf16.mxu0 0
    %316 = vmatpush1.bf16.xpose.msra.mxu0 0
    %317 = vmatprep.subr.bf16.mxu0 0
    %318 = vmatpush1.bf16.xpose.msra.mxu0 0
    %319 = vmatprep.mubr.bf16.mxu0 0
    %320 = vmatmul.mubr.bf16.gmra.mrb[0].mxu0 %v282
    %v321 = vpop.f32.mrb[0].mxu0
    %v322 = vadd.f32 %v92, %v321
    %v323 = vpop.f32.mrb[0].mxu0
    %v324 = vpop.f32.mrb[0].mxu0
    %v325 = vpop.f32.mrb[0].mxu0
    %326 = vdwg.mxu0
    %v328 = vsel %vm280, %v265, 0
    %v331 = vsel %vm280, %v273, 0
    %333 = vmatprep.subr.bf16.mxu0 0
    %334 = vmatpush1.bf16.xpose.msra.mxu0 %v331
    %335 = vmatprep.subr.bf16.mxu0 0
    %336 = vmatpush1.bf16.xpose.msra.mxu0 0
    %337 = vmatprep.subr.bf16.mxu0 0
    %338 = vmatpush1.bf16.xpose.msra.mxu0 0
    %339 = vmatprep.subr.bf16.mxu0 0
    %340 = vmatpush1.bf16.xpose.msra.mxu0 0
    %341 = vmatprep.subr.bf16.mxu0 0
    %342 = vmatpush1.bf16.xpose.msra.mxu0 0
    %343 = vmatprep.subr.bf16.mxu0 0
    %344 = vmatpush1.bf16.xpose.msra.mxu0 0
    %345 = vmatprep.subr.bf16.mxu0 0
    %346 = vmatpush1.bf16.xpose.msra.mxu0 0
    %347 = vmatprep.subr.bf16.mxu0 0
    %348 = vmatpush1.bf16.xpose.msra.mxu0 0
    %349 = vmatprep.subr.bf16.mxu0 0
    %350 = vmatpush1.bf16.xpose.msra.mxu0 0
    %351 = vmatprep.subr.bf16.mxu0 0
    %352 = vmatpush1.bf16.xpose.msra.mxu0 0
    %353 = vmatprep.subr.bf16.mxu0 0
    %354 = vmatpush1.bf16.xpose.msra.mxu0 0
    %355 = vmatprep.subr.bf16.mxu0 0
    %356 = vmatpush1.bf16.xpose.msra.mxu0 0
    %357 = vmatprep.subr.bf16.mxu0 0
    %358 = vmatpush1.bf16.xpose.msra.mxu0 0
    %359 = vmatprep.subr.bf16.mxu0 0
    %360 = vmatpush1.bf16.xpose.msra.mxu0 0
    %361 = vmatprep.subr.bf16.mxu0 0
    %362 = vmatpush1.bf16.xpose.msra.mxu0 0
    %363 = vmatprep.subr.bf16.mxu0 0
    %364 = vmatpush1.bf16.xpose.msra.mxu0 0
    %365 = vmatprep.mubr.bf16.mxu0 0
    %366 = vmatmul.mubr.bf16.gmra.mrb[0].mxu0 %v328
    %v367 = vpop.f32.mrb[0].mxu0
    %v368 = vadd.f32 %v92, %v367
    %v369 = vpop.f32.mrb[0].mxu0
    %v370 = vpop.f32.mrb[0].mxu0
    %v371 = vpop.f32.mrb[0].mxu0
    %372 = vdwg.mxu0
    %v374 = vsel %vm280, %v266, 0
    %v377 = vsel %vm280, %v274, 0
    %379 = vmatprep.subr.bf16.mxu0 0
    %380 = vmatpush1.bf16.xpose.msra.mxu0 %v377
    %381 = vmatprep.subr.bf16.mxu0 0
    %382 = vmatpush1.bf16.xpose.msra.mxu0 0
    %383 = vmatprep.subr.bf16.mxu0 0
    %384 = vmatpush1.bf16.xpose.msra.mxu0 0
    %385 = vmatprep.subr.bf16.mxu0 0
    %386 = vmatpush1.bf16.xpose.msra.mxu0 0
    %387 = vmatprep.subr.bf16.mxu0 0
    %388 = vmatpush1.bf16.xpose.msra.mxu0 0
    %389 = vmatprep.subr.bf16.mxu0 0
    %390 = vmatpush1.bf16.xpose.msra.mxu0 0
    %391 = vmatprep.subr.bf16.mxu0 0
    %392 = vmatpush1.bf16.xpose.msra.mxu0 0
    %393 = vmatprep.subr.bf16.mxu0 0
    %394 = vmatpush1.bf16.xpose.msra.mxu0 0
    %395 = vmatprep.subr.bf16.mxu0 0
    %396 = vmatpush1.bf16.xpose.msra.mxu0 0
    %397 = vmatprep.subr.bf16.mxu0 0
    %398 = vmatpush1.bf16.xpose.msra.mxu0 0
    %399 = vmatprep.subr.bf16.mxu0 0
    %400 = vmatpush1.bf16.xpose.msra.mxu0 0
    %401 = vmatprep.subr.bf16.mxu0 0
    %402 = vmatpush1.bf16.xpose.msra.mxu0 0
    %403 = vmatprep.subr.bf16.mxu0 0
    %404 = vmatpush1.bf16.xpose.msra.mxu0 0
    %405 = vmatprep.subr.bf16.mxu0 0
    %406 = vmatpush1.bf16.xpose.msra.mxu0 0
    %407 = vmatprep.subr.bf16.mxu0 0
    %408 = vmatpush1.bf16.xpose.msra.mxu0 0
    %409 = vmatprep.subr.bf16.mxu0 0
    %410 = vmatpush1.bf16.xpose.msra.mxu0 0
    %411 = vmatprep.mubr.bf16.mxu0 0
    %412 = vmatmul.mubr.bf16.gmra.mrb[0].mxu0 %v374
    %v413 = vpop.f32.mrb[0].mxu0
    %v414 = vadd.f32 %v92, %v413
    %v415 = vpop.f32.mrb[0].mxu0
    %v416 = vpop.f32.mrb[0].mxu0
    %v417 = vpop.f32.mrb[0].mxu0
    %418 = vdwg.mxu0
    %v420 = vsel %vm280, %v267, 0
    %v423 = vsel %vm280, %v275, 0
    %425 = vmatprep.subr.bf16.mxu0 0
    %426 = vmatpush1.bf16.xpose.msra.mxu0 %v423
    %427 = vmatprep.subr.bf16.mxu0 0
    %428 = vmatpush1.bf16.xpose.msra.mxu0 0
    %429 = vmatprep.subr.bf16.mxu0 0
    %430 = vmatpush1.bf16.xpose.msra.mxu0 0
    %431 = vmatprep.subr.bf16.mxu0 0
    %432 = vmatpush1.bf16.xpose.msra.mxu0 0
    %433 = vmatprep.subr.bf16.mxu0 0
    %434 = vmatpush1.bf16.xpose.msra.mxu0 0
    %435 = vmatprep.subr.bf16.mxu0 0
    %436 = vmatpush1.bf16.xpose.msra.mxu0 0
    %437 = vmatprep.subr.bf16.mxu0 0
    %438 = vmatpush1.bf16.xpose.msra.mxu0 0
    %439 = vmatprep.subr.bf16.mxu0 0
    %440 = vmatpush1.bf16.xpose.msra.mxu0 0
    %441 = vmatprep.subr.bf16.mxu0 0
    %442 = vmatpush1.bf16.xpose.msra.mxu0 0
    %443 = vmatprep.subr.bf16.mxu0 0
    %444 = vmatpush1.bf16.xpose.msra.mxu0 0
    %445 = vmatprep.subr.bf16.mxu0 0
    %446 = vmatpush1.bf16.xpose.msra.mxu0 0
    %447 = vmatprep.subr.bf16.mxu0 0
    %448 = vmatpush1.bf16.xpose.msra.mxu0 0
    %449 = vmatprep.subr.bf16.mxu0 0
    %450 = vmatpush1.bf16.xpose.msra.mxu0 0
    %451 = vmatprep.subr.bf16.mxu0 0
    %452 = vmatpush1.bf16.xpose.msra.mxu0 0
    %453 = vmatprep.subr.bf16.mxu0 0
    %454 = vmatpush1.bf16.xpose.msra.mxu0 0
    %455 = vmatprep.subr.bf16.mxu0 0
    %456 = vmatpush1.bf16.xpose.msra.mxu0 0
    %457 = vmatprep.mubr.bf16.mxu0 0
    %458 = vmatmul.mubr.bf16.gmra.mrb[0].mxu0 %v420
    %v459 = vpop.f32.mrb[0].mxu0
    %v460 = vadd.f32 %v92, %v459
    %v461 = vpop.f32.mrb[0].mxu0
    %v462 = vpop.f32.mrb[0].mxu0
    %v463 = vpop.f32.mrb[0].mxu0
    %464 = vdwg.mxu0
    %v466 = vsel %vm280, %v268, 0
    %v469 = vsel %vm280, %v276, 0
    %471 = vmatprep.subr.bf16.mxu0 0
    %472 = vmatpush1.bf16.xpose.msra.mxu0 %v469
    %473 = vmatprep.subr.bf16.mxu0 0
    %474 = vmatpush1.bf16.xpose.msra.mxu0 0
    %475 = vmatprep.subr.bf16.mxu0 0
    %476 = vmatpush1.bf16.xpose.msra.mxu0 0
    %477 = vmatprep.subr.bf16.mxu0 0
    %478 = vmatpush1.bf16.xpose.msra.mxu0 0
    %479 = vmatprep.subr.bf16.mxu0 0
    %480 = vmatpush1.bf16.xpose.msra.mxu0 0
    %481 = vmatprep.subr.bf16.mxu0 0
    %482 = vmatpush1.bf16.xpose.msra.mxu0 0
    %483 = vmatprep.subr.bf16.mxu0 0
    %484 = vmatpush1.bf16.xpose.msra.mxu0 0
    %485 = vmatprep.subr.bf16.mxu0 0
    %486 = vmatpush1.bf16.xpose.msra.mxu0 0
    %487 = vmatprep.subr.bf16.mxu0 0
    %488 = vmatpush1.bf16.xpose.msra.mxu0 0
    %489 = vmatprep.subr.bf16.mxu0 0
    %490 = vmatpush1.bf16.xpose.msra.mxu0 0
    %491 = vmatprep.subr.bf16.mxu0 0
    %492 = vmatpush1.bf16.xpose.msra.mxu0 0
    %493 = vmatprep.subr.bf16.mxu0 0
    %494 = vmatpush1.bf16.xpose.msra.mxu0 0
    %495 = vmatprep.subr.bf16.mxu0 0
    %496 = vmatpush1.bf16.xpose.msra.mxu0 0
    %497 = vmatprep.subr.bf16.mxu0 0
    %498 = vmatpush1.bf16.xpose.msra.mxu0 0
    %499 = vmatprep.subr.bf16.mxu0 0
    %500 = vmatpush1.bf16.xpose.msra.mxu0 0
    %501 = vmatprep.subr.bf16.mxu0 0
    %502 = vmatpush1.bf16.xpose.msra.mxu0 0
    %503 = vmatprep.mubr.bf16.mxu0 0
    %504 = vmatmul.mubr.bf16.gmra.mrb[0].mxu0 %v466
    %v505 = vpop.f32.mrb[0].mxu0
    %v506 = vadd.f32 %v92, %v505
    %v507 = vpop.f32.mrb[0].mxu0
    %v508 = vpop.f32.mrb[0].mxu0
    %v509 = vpop.f32.mrb[0].mxu0
    %510 = vdwg.mxu0
    %v512 = vsel %vm280, %v269, 0
    %v515 = vsel %vm280, %v277, 0
    %517 = vmatprep.subr.bf16.mxu0 0
    %518 = vmatpush1.bf16.xpose.msra.mxu0 %v515
    %519 = vmatprep.subr.bf16.mxu0 0
    %520 = vmatpush1.bf16.xpose.msra.mxu0 0
    %521 = vmatprep.subr.bf16.mxu0 0
    %522 = vmatpush1.bf16.xpose.msra.mxu0 0
    %523 = vmatprep.subr.bf16.mxu0 0
    %524 = vmatpush1.bf16.xpose.msra.mxu0 0
    %525 = vmatprep.subr.bf16.mxu0 0
    %526 = vmatpush1.bf16.xpose.msra.mxu0 0
    %527 = vmatprep.subr.bf16.mxu0 0
    %528 = vmatpush1.bf16.xpose.msra.mxu0 0
    %529 = vmatprep.subr.bf16.mxu0 0
    %530 = vmatpush1.bf16.xpose.msra.mxu0 0
    %531 = vmatprep.subr.bf16.mxu0 0
    %532 = vmatpush1.bf16.xpose.msra.mxu0 0
    %533 = vmatprep.subr.bf16.mxu0 0
    %534 = vmatpush1.bf16.xpose.msra.mxu0 0
    %535 = vmatprep.subr.bf16.mxu0 0
    %536 = vmatpush1.bf16.xpose.msra.mxu0 0
    %537 = vmatprep.subr.bf16.mxu0 0
    %538 = vmatpush1.bf16.xpose.msra.mxu0 0
    %539 = vmatprep.subr.bf16.mxu0 0
    %540 = vmatpush1.bf16.xpose.msra.mxu0 0
    %541 = vmatprep.subr.bf16.mxu0 0
    %542 = vmatpush1.bf16.xpose.msra.mxu0 0
    %543 = vmatprep.subr.bf16.mxu0 0
    %544 = vmatpush1.bf16.xpose.msra.mxu0 0
    %545 = vmatprep.subr.bf16.mxu0 0
    %546 = vmatpush1.bf16.xpose.msra.mxu0 0
    %547 = vmatprep.subr.bf16.mxu0 0
    %548 = vmatpush1.bf16.xpose.msra.mxu0 0
    %549 = vmatprep.mubr.bf16.mxu0 0
    %550 = vmatmul.mubr.bf16.gmra.mrb[0].mxu0 %v512
    %v551 = vpop.f32.mrb[0].mxu0
    %v552 = vadd.f32 %v92, %v551
    %v553 = vpop.f32.mrb[0].mxu0
    %v554 = vpop.f32.mrb[0].mxu0
    %v555 = vpop.f32.mrb[0].mxu0
    %556 = vdwg.mxu0
    %v558 = vsel %vm280, %v270, 0
    %v561 = vsel %vm280, %v278, 0
    %563 = vmatprep.subr.bf16.mxu0 0
    %564 = vmatpush1.bf16.xpose.msra.mxu0 %v561
    %565 = vmatprep.subr.bf16.mxu0 0
    %566 = vmatpush1.bf16.xpose.msra.mxu0 0
    %567 = vmatprep.subr.bf16.mxu0 0
    %568 = vmatpush1.bf16.xpose.msra.mxu0 0
    %569 = vmatprep.subr.bf16.mxu0 0
    %570 = vmatpush1.bf16.xpose.msra.mxu0 0
    %571 = vmatprep.subr.bf16.mxu0 0
    %572 = vmatpush1.bf16.xpose.msra.mxu0 0
    %573 = vmatprep.subr.bf16.mxu0 0
    %574 = vmatpush1.bf16.xpose.msra.mxu0 0
    %575 = vmatprep.subr.bf16.mxu0 0
    %576 = vmatpush1.bf16.xpose.msra.mxu0 0
    %577 = vmatprep.subr.bf16.mxu0 0
    %578 = vmatpush1.bf16.xpose.msra.mxu0 0
    %579 = vmatprep.subr.bf16.mxu0 0
    %580 = vmatpush1.bf16.xpose.msra.mxu0 0
    %581 = vmatprep.subr.bf16.mxu0 0
    %582 = vmatpush1.bf16.xpose.msra.mxu0 0
    %583 = vmatprep.subr.bf16.mxu0 0
    %584 = vmatpush1.bf16.xpose.msra.mxu0 0
    %585 = vmatprep.subr.bf16.mxu0 0
    %586 = vmatpush1.bf16.xpose.msra.mxu0 0
    %587 = vmatprep.subr.bf16.mxu0 0
    %588 = vmatpush1.bf16.xpose.msra.mxu0 0
    %589 = vmatprep.subr.bf16.mxu0 0
    %590 = vmatpush1.bf16.xpose.msra.mxu0 0
    %591 = vmatprep.subr.bf16.mxu0 0
    %592 = vmatpush1.bf16.xpose.msra.mxu0 0
    %593 = vmatprep.subr.bf16.mxu0 0
    %594 = vmatpush1.bf16.xpose.msra.mxu0 0
    %595 = vmatprep.mubr.bf16.mxu0 0
    %596 = vmatmul.mubr.bf16.gmra.mrb[0].mxu0 %v558
    %v597 = vpop.f32.mrb[0].mxu0
    %v598 = vadd.f32 %v92, %v597
    %v599 = vpop.f32.mrb[0].mxu0
    %v600 = vpop.f32.mrb[0].mxu0
    %v601 = vpop.f32.mrb[0].mxu0
    %602 = vdwg.mxu0
    %v604 = vsel %vm280, %v271, 0
    %v607 = vsel %vm280, %v279, 0
    %609 = vmatprep.subr.bf16.mxu0 0
    %610 = vmatpush1.bf16.xpose.msra.mxu0 %v607
    %611 = vmatprep.subr.bf16.mxu0 0
    %612 = vmatpush1.bf16.xpose.msra.mxu0 0
    %613 = vmatprep.subr.bf16.mxu0 0
    %614 = vmatpush1.bf16.xpose.msra.mxu0 0
    %615 = vmatprep.subr.bf16.mxu0 0
    %616 = vmatpush1.bf16.xpose.msra.mxu0 0
    %617 = vmatprep.subr.bf16.mxu0 0
    %618 = vmatpush1.bf16.xpose.msra.mxu0 0
    %619 = vmatprep.subr.bf16.mxu0 0
    %620 = vmatpush1.bf16.xpose.msra.mxu0 0
    %621 = vmatprep.subr.bf16.mxu0 0
    %622 = vmatpush1.bf16.xpose.msra.mxu0 0
    %623 = vmatprep.subr.bf16.mxu0 0
    %624 = vmatpush1.bf16.xpose.msra.mxu0 0
    %625 = vmatprep.subr.bf16.mxu0 0
    %626 = vmatpush1.bf16.xpose.msra.mxu0 0
    %627 = vmatprep.subr.bf16.mxu0 0
    %628 = vmatpush1.bf16.xpose.msra.mxu0 0
    %629 = vmatprep.subr.bf16.mxu0 0
    %630 = vmatpush1.bf16.xpose.msra.mxu0 0
    %631 = vmatprep.subr.bf16.mxu0 0
    %632 = vmatpush1.bf16.xpose.msra.mxu0 0
    %633 = vmatprep.subr.bf16.mxu0 0
    %634 = vmatpush1.bf16.xpose.msra.mxu0 0
    %635 = vmatprep.subr.bf16.mxu0 0
    %636 = vmatpush1.bf16.xpose.msra.mxu0 0
    %637 = vmatprep.subr.bf16.mxu0 0
    %638 = vmatpush1.bf16.xpose.msra.mxu0 0
    %639 = vmatprep.subr.bf16.mxu0 0
    %640 = vmatpush1.bf16.xpose.msra.mxu0 0
    %641 = vmatprep.mubr.bf16.mxu0 0
    %642 = vmatmul.mubr.bf16.gmra.mrb[0].mxu0 %v604
    %v643 = vpop.f32.mrb[0].mxu0
    %v644 = vadd.f32 %v92, %v643
    %v645 = vpop.f32.mrb[0].mxu0
    %v646 = vpop.f32.mrb[0].mxu0
    %v647 = vpop.f32.mrb[0].mxu0
    %648 = vdwg.mxu0
    %v649 = vsel %vm280, %v322, -inf
    %650 = vmax.xlane.f32.xlu0 %v649
    %v651 = vpop.xlane.xlu0 %650
    %v652 = vsel %vm280, %v368, -inf
    %653 = vmax.xlane.f32.xlu0 %v652
    %v654 = vpop.xlane.xlu0 %653
    %v655 = vsel %vm280, %v414, -inf
    %656 = vmax.xlane.f32.xlu0 %v655
    %v657 = vpop.xlane.xlu0 %656
    %v658 = vsel %vm280, %v460, -inf
    %659 = vmax.xlane.f32.xlu0 %v658
    %v660 = vpop.xlane.xlu0 %659
    %v661 = vsel %vm280, %v506, -inf
    %662 = vmax.xlane.f32.xlu0 %v661
    %v663 = vpop.xlane.xlu0 %662
    %v664 = vsel %vm280, %v552, -inf
    %665 = vmax.xlane.f32.xlu0 %v664
    %v666 = vpop.xlane.xlu0 %665
    %v667 = vsel %vm280, %v598, -inf
    %668 = vmax.xlane.f32.xlu0 %v667
    %v669 = vpop.xlane.xlu0 %668
    %v670 = vsel %vm280, %v644, -inf
    %671 = vmax.xlane.f32.xlu0 %v670
    %v672 = vpop.xlane.xlu0 %671
    %v673 = vsub.f32 %v322, %v651
    %v674 = vsub.f32 %v368, %v654
    %v675 = vsub.f32 %v414, %v657
    %v676 = vsub.f32 %v460, %v660
    %v677 = vsub.f32 %v506, %v663
    %v678 = vsub.f32 %v552, %v666
    %v679 = vsub.f32 %v598, %v669
    %v680 = vsub.f32 %v644, %v672
    %v681 = vmul.f32 %v673, 1.442695
    %v682 = vpow.pop %v681
    %v683 = vmul.f32 %v674, 1.442695
    %v684 = vpow.pop %v683
    %v685 = vmul.f32 %v675, 1.442695
    %v686 = vpow.pop %v685
    %v687 = vmul.f32 %v676, 1.442695
    %v688 = vpow.pop %v687
    %v689 = vmul.f32 %v677, 1.442695
    %v690 = vpow.pop %v689
    %v691 = vmul.f32 %v678, 1.442695
    %v692 = vpow.pop %v691
    %v693 = vmul.f32 %v679, 1.442695
    %v694 = vpow.pop %v693
    %v695 = vmul.f32 %v680, 1.442695
    %v696 = vpow.pop %v695
    %v697 = vsel %vm280, %v682, 0.0
    %698 = vadd.xlane.f32.xlu0 %v697
    %v699 = vpop.xlane.xlu0 %698
    %v700 = vsel %vm280, %v684, 0.0
    %701 = vadd.xlane.f32.xlu0 %v700
    %v702 = vpop.xlane.xlu0 %701
    %v703 = vsel %vm280, %v686, 0.0
    %704 = vadd.xlane.f32.xlu0 %v703
    %v705 = vpop.xlane.xlu0 %704
    %v706 = vsel %vm280, %v688, 0.0
    %707 = vadd.xlane.f32.xlu0 %v706
    %v708 = vpop.xlane.xlu0 %707
    %v709 = vsel %vm280, %v690, 0.0
    %710 = vadd.xlane.f32.xlu0 %v709
    %v711 = vpop.xlane.xlu0 %710
    %v712 = vsel %vm280, %v692, 0.0
    %713 = vadd.xlane.f32.xlu0 %v712
    %v714 = vpop.xlane.xlu0 %713
    %v715 = vsel %vm280, %v694, 0.0
    %716 = vadd.xlane.f32.xlu0 %v715
    %v717 = vpop.xlane.xlu0 %716
    %v718 = vsel %vm280, %v696, 0.0
    %719 = vadd.xlane.f32.xlu0 %v718
    %v720 = vpop.xlane.xlu0 %719
    %v721 = vrcp.pop %v699
    %v722 = vrcp.pop %v702
    %v723 = vrcp.pop %v705
    %v724 = vrcp.pop %v708
    %v725 = vrcp.pop %v711
    %v726 = vrcp.pop %v714
    %v727 = vrcp.pop %v717
    %v728 = vrcp.pop %v720
    %v729 = vmul.f32 %v682, %v721
    %v730 = vmul.f32 %v684, %v722
    %v731 = vmul.f32 %v686, %v723
    %v732 = vmul.f32 %v688, %v724
    %v733 = vmul.f32 %v690, %v725
    %v734 = vmul.f32 %v692, %v726
    %v735 = vmul.f32 %v694, %v727
    %v736 = vmul.f32 %v696, %v728
    %v737 = vpack.c.bf16 %v729, %v729
    %v738 = vpack.c.bf16 %v730, %v730
    %v739 = vpack.c.bf16 %v731, %v731
    %v740 = vpack.c.bf16 %v732, %v732
    %v741 = vpack.c.bf16 %v733, %v733
    %v742 = vpack.c.bf16 %v734, %v734
    %v743 = vpack.c.bf16 %v735, %v735
    %v744 = vpack.c.bf16 %v736, %v736
    %746 = vrot.lane.b32.xlu0 %v272, 96
    %v747 = vpop.permute.xlu0 %746
    %v749 = vsel %vm280, %v737, 0
    %vm751 = vcmask 1043456
    %v753 = vsel %vm751, %v747, 0
    %755 = vmatprep.subr.bf16.mxu0 0
    %756 = vmatpush1.bf16.msra.mxu0 %v753
    %757 = vmatprep.subr.bf16.mxu0 0
    %758 = vmatpush1.bf16.msra.mxu0 0
    %759 = vmatprep.subr.bf16.mxu0 0
    %760 = vmatpush1.bf16.msra.mxu0 0
    %761 = vmatprep.subr.bf16.mxu0 0
    %762 = vmatpush1.bf16.msra.mxu0 0
    %763 = vmatprep.subr.bf16.mxu0 0
    %764 = vmatpush1.bf16.msra.mxu0 0
    %765 = vmatprep.subr.bf16.mxu0 0
    %766 = vmatpush1.bf16.msra.mxu0 0
    %767 = vmatprep.subr.bf16.mxu0 0
    %768 = vmatpush1.bf16.msra.mxu0 0
    %769 = vmatprep.subr.bf16.mxu0 0
    %770 = vmatpush1.bf16.msra.mxu0 0
    %771 = vmatprep.subr.bf16.mxu0 0
    %772 = vmatpush1.bf16.msra.mxu0 0
    %773 = vmatprep.subr.bf16.mxu0 0
    %774 = vmatpush1.bf16.msra.mxu0 0
    %775 = vmatprep.subr.bf16.mxu0 0
    %776 = vmatpush1.bf16.msra.mxu0 0
    %777 = vmatprep.subr.bf16.mxu0 0
    %778 = vmatpush1.bf16.msra.mxu0 0
    %779 = vmatprep.subr.bf16.mxu0 0
    %780 = vmatpush1.bf16.msra.mxu0 0
    %781 = vmatprep.subr.bf16.mxu0 0
    %782 = vmatpush1.bf16.msra.mxu0 0
    %783 = vmatprep.subr.bf16.mxu0 0
    %784 = vmatpush1.bf16.msra.mxu0 0
    %785 = vmatprep.subr.bf16.mxu0 0
    %786 = vmatpush1.bf16.msra.mxu0 0
    %787 = vmatprep.mubr.bf16.mxu0 0
    %788 = vmatmul.mubr.bf16.gmra.mrb[0].mxu0 %v749
    %v789 = vpop.f32.mrb[0].mxu0
    %v790 = vadd.f32 0.0, %v789
    %v791 = vpop.f32.mrb[0].mxu0
    %v792 = vpop.f32.mrb[0].mxu0
    %v793 = vpop.f32.mrb[0].mxu0
    %794 = vdwg.mxu0
    %796 = vrot.lane.b32.xlu0 %v273, 96
    %v797 = vpop.permute.xlu0 %796
    %v799 = vsel %vm280, %v738, 0
    %v802 = vsel %vm751, %v797, 0
    %804 = vmatprep.subr.bf16.mxu0 0
    %805 = vmatpush1.bf16.msra.mxu0 %v802
    %806 = vmatprep.subr.bf16.mxu0 0
    %807 = vmatpush1.bf16.msra.mxu0 0
    %808 = vmatprep.subr.bf16.mxu0 0
    %809 = vmatpush1.bf16.msra.mxu0 0
    %810 = vmatprep.subr.bf16.mxu0 0
    %811 = vmatpush1.bf16.msra.mxu0 0
    %812 = vmatprep.subr.bf16.mxu0 0
    %813 = vmatpush1.bf16.msra.mxu0 0
    %814 = vmatprep.subr.bf16.mxu0 0
    %815 = vmatpush1.bf16.msra.mxu0 0
    %816 = vmatprep.subr.bf16.mxu0 0
    %817 = vmatpush1.bf16.msra.mxu0 0
    %818 = vmatprep.subr.bf16.mxu0 0
    %819 = vmatpush1.bf16.msra.mxu0 0
    %820 = vmatprep.subr.bf16.mxu0 0
    %821 = vmatpush1.bf16.msra.mxu0 0
    %822 = vmatprep.subr.bf16.mxu0 0
    %823 = vmatpush1.bf16.msra.mxu0 0
    %824 = vmatprep.subr.bf16.mxu0 0
    %825 = vmatpush1.bf16.msra.mxu0 0
    %826 = vmatprep.subr.bf16.mxu0 0
    %827 = vmatpush1.bf16.msra.mxu0 0
    %828 = vmatprep.subr.bf16.mxu0 0
    %829 = vmatpush1.bf16.msra.mxu0 0
    %830 = vmatprep.subr.bf16.mxu0 0
    %831 = vmatpush1.bf16.msra.mxu0 0
    %832 = vmatprep.subr.bf16.mxu0 0
    %833 = vmatpush1.bf16.msra.mxu0 0
    %834 = vmatprep.subr.bf16.mxu0 0
    %835 = vmatpush1.bf16.msra.mxu0 0
    %836 = vmatprep.mubr.bf16.mxu0 0
    %837 = vmatmul.mubr.bf16.gmra.mrb[0].mxu0 %v799
    %v838 = vpop.f32.mrb[0].mxu0
    %v839 = vadd.f32 0.0, %v838
    %v840 = vpop.f32.mrb[0].mxu0
    %v841 = vpop.f32.mrb[0].mxu0
    %v842 = vpop.f32.mrb[0].mxu0
    %843 = vdwg.mxu0
    %845 = vrot.lane.b32.xlu0 %v274, 96
    %v846 = vpop.permute.xlu0 %845
    %v848 = vsel %vm280, %v739, 0
    %v851 = vsel %vm751, %v846, 0
    %853 = vmatprep.subr.bf16.mxu0 0
    %854 = vmatpush1.bf16.msra.mxu0 %v851
    %855 = vmatprep.subr.bf16.mxu0 0
    %856 = vmatpush1.bf16.msra.mxu0 0
    %857 = vmatprep.subr.bf16.mxu0 0
    %858 = vmatpush1.bf16.msra.mxu0 0
    %859 = vmatprep.subr.bf16.mxu0 0
    %860 = vmatpush1.bf16.msra.mxu0 0
    %861 = vmatprep.subr.bf16.mxu0 0
    %862 = vmatpush1.bf16.msra.mxu0 0
    %863 = vmatprep.subr.bf16.mxu0 0
    %864 = vmatpush1.bf16.msra.mxu0 0
    %865 = vmatprep.subr.bf16.mxu0 0
    %866 = vmatpush1.bf16.msra.mxu0 0
    %867 = vmatprep.subr.bf16.mxu0 0
    %868 = vmatpush1.bf16.msra.mxu0 0
    %869 = vmatprep.subr.bf16.mxu0 0
    %870 = vmatpush1.bf16.msra.mxu0 0
    %871 = vmatprep.subr.bf16.mxu0 0
    %872 = vmatpush1.bf16.msra.mxu0 0
    %873 = vmatprep.subr.bf16.mxu0 0
    %874 = vmatpush1.bf16.msra.mxu0 0
    %875 = vmatprep.subr.bf16.mxu0 0
    %876 = vmatpush1.bf16.msra.mxu0 0
    %877 = vmatprep.subr.bf16.mxu0 0
    %878 = vmatpush1.bf16.msra.mxu0 0
    %879 = vmatprep.subr.bf16.mxu0 0
    %880 = vmatpush1.bf16.msra.mxu0 0
    %881 = vmatprep.subr.bf16.mxu0 0
    %882 = vmatpush1.bf16.msra.mxu0 0
    %883 = vmatprep.subr.bf16.mxu0 0
    %884 = vmatpush1.bf16.msra.mxu0 0
    %885 = vmatprep.mubr.bf16.mxu0 0
    %886 = vmatmul.mubr.bf16.gmra.mrb[0].mxu0 %v848
    %v887 = vpop.f32.mrb[0].mxu0
    %v888 = vadd.f32 0.0, %v887
    %v889 = vpop.f32.mrb[0].mxu0
    %v890 = vpop.f32.mrb[0].mxu0
    %v891 = vpop.f32.mrb[0].mxu0
    %892 = vdwg.mxu0
    %894 = vrot.lane.b32.xlu0 %v275, 96
    %v895 = vpop.permute.xlu0 %894
    %v897 = vsel %vm280, %v740, 0
    %v900 = vsel %vm751, %v895, 0
    %902 = vmatprep.subr.bf16.mxu0 0
    %903 = vmatpush1.bf16.msra.mxu0 %v900
    %904 = vmatprep.subr.bf16.mxu0 0
    %905 = vmatpush1.bf16.msra.mxu0 0
    %906 = vmatprep.subr.bf16.mxu0 0
    %907 = vmatpush1.bf16.msra.mxu0 0
    %908 = vmatprep.subr.bf16.mxu0 0
    %909 = vmatpush1.bf16.msra.mxu0 0
    %910 = vmatprep.subr.bf16.mxu0 0
    %911 = vmatpush1.bf16.msra.mxu0 0
    %912 = vmatprep.subr.bf16.mxu0 0
    %913 = vmatpush1.bf16.msra.mxu0 0
    %914 = vmatprep.subr.bf16.mxu0 0
    %915 = vmatpush1.bf16.msra.mxu0 0
    %916 = vmatprep.subr.bf16.mxu0 0
    %917 = vmatpush1.bf16.msra.mxu0 0
    %918 = vmatprep.subr.bf16.mxu0 0
    %919 = vmatpush1.bf16.msra.mxu0 0
    %920 = vmatprep.subr.bf16.mxu0 0
    %921 = vmatpush1.bf16.msra.mxu0 0
    %922 = vmatprep.subr.bf16.mxu0 0
    %923 = vmatpush1.bf16.msra.mxu0 0
    %924 = vmatprep.subr.bf16.mxu0 0
    %925 = vmatpush1.bf16.msra.mxu0 0
    %926 = vmatprep.subr.bf16.mxu0 0
    %927 = vmatpush1.bf16.msra.mxu0 0
    %928 = vmatprep.subr.bf16.mxu0 0
    %929 = vmatpush1.bf16.msra.mxu0 0
    %930 = vmatprep.subr.bf16.mxu0 0
    %931 = vmatpush1.bf16.msra.mxu0 0
    %932 = vmatprep.subr.bf16.mxu0 0
    %933 = vmatpush1.bf16.msra.mxu0 0
    %934 = vmatprep.mubr.bf16.mxu0 0
    %935 = vmatmul.mubr.bf16.gmra.mrb[0].mxu0 %v897
    %v936 = vpop.f32.mrb[0].mxu0
    %v937 = vadd.f32 0.0, %v936
    %v938 = vpop.f32.mrb[0].mxu0
    %v939 = vpop.f32.mrb[0].mxu0
    %v940 = vpop.f32.mrb[0].mxu0
    %941 = vdwg.mxu0
    %943 = vrot.lane.b32.xlu0 %v276, 96
    %v944 = vpop.permute.xlu0 %943
    %v946 = vsel %vm280, %v741, 0
    %v949 = vsel %vm751, %v944, 0
    %951 = vmatprep.subr.bf16.mxu0 0
    %952 = vmatpush1.bf16.msra.mxu0 %v949
    %953 = vmatprep.subr.bf16.mxu0 0
    %954 = vmatpush1.bf16.msra.mxu0 0
    %955 = vmatprep.subr.bf16.mxu0 0
    %956 = vmatpush1.bf16.msra.mxu0 0
    %957 = vmatprep.subr.bf16.mxu0 0
    %958 = vmatpush1.bf16.msra.mxu0 0
    %959 = vmatprep.subr.bf16.mxu0 0
    %960 = vmatpush1.bf16.msra.mxu0 0
    %961 = vmatprep.subr.bf16.mxu0 0
    %962 = vmatpush1.bf16.msra.mxu0 0
    %963 = vmatprep.subr.bf16.mxu0 0
    %964 = vmatpush1.bf16.msra.mxu0 0
    %965 = vmatprep.subr.bf16.mxu0 0
    %966 = vmatpush1.bf16.msra.mxu0 0
    %967 = vmatprep.subr.bf16.mxu0 0
    %968 = vmatpush1.bf16.msra.mxu0 0
    %969 = vmatprep.subr.bf16.mxu0 0
    %970 = vmatpush1.bf16.msra.mxu0 0
    %971 = vmatprep.subr.bf16.mxu0 0
    %972 = vmatpush1.bf16.msra.mxu0 0
    %973 = vmatprep.subr.bf16.mxu0 0
    %974 = vmatpush1.bf16.msra.mxu0 0
    %975 = vmatprep.subr.bf16.mxu0 0
    %976 = vmatpush1.bf16.msra.mxu0 0
    %977 = vmatprep.subr.bf16.mxu0 0
    %978 = vmatpush1.bf16.msra.mxu0 0
    %979 = vmatprep.subr.bf16.mxu0 0
    %980 = vmatpush1.bf16.msra.mxu0 0
    %981 = vmatprep.subr.bf16.mxu0 0
    %982 = vmatpush1.bf16.msra.mxu0 0
    %983 = vmatprep.mubr.bf16.mxu0 0
    %984 = vmatmul.mubr.bf16.gmra.mrb[0].mxu0 %v946
    %v985 = vpop.f32.mrb[0].mxu0
    %v986 = vadd.f32 0.0, %v985
    %v987 = vpop.f32.mrb[0].mxu0
    %v988 = vpop.f32.mrb[0].mxu0
    %v989 = vpop.f32.mrb[0].mxu0
    %990 = vdwg.mxu0
    %992 = vrot.lane.b32.xlu0 %v277, 96
    %v993 = vpop.permute.xlu0 %992
    %v995 = vsel %vm280, %v742, 0
    %v998 = vsel %vm751, %v993, 0
    %1000 = vmatprep.subr.bf16.mxu0 0
    %1001 = vmatpush1.bf16.msra.mxu0 %v998
    %1002 = vmatprep.subr.bf16.mxu0 0
    %1003 = vmatpush1.bf16.msra.mxu0 0
    %1004 = vmatprep.subr.bf16.mxu0 0
    %1005 = vmatpush1.bf16.msra.mxu0 0
    %1006 = vmatprep.subr.bf16.mxu0 0
    %1007 = vmatpush1.bf16.msra.mxu0 0
    %1008 = vmatprep.subr.bf16.mxu0 0
    %1009 = vmatpush1.bf16.msra.mxu0 0
    %1010 = vmatprep.subr.bf16.mxu0 0
    %1011 = vmatpush1.bf16.msra.mxu0 0
    %1012 = vmatprep.subr.bf16.mxu0 0
    %1013 = vmatpush1.bf16.msra.mxu0 0
    %1014 = vmatprep.subr.bf16.mxu0 0
    %1015 = vmatpush1.bf16.msra.mxu0 0
    %1016 = vmatprep.subr.bf16.mxu0 0
    %1017 = vmatpush1.bf16.msra.mxu0 0
    %1018 = vmatprep.subr.bf16.mxu0 0
    %1019 = vmatpush1.bf16.msra.mxu0 0
    %1020 = vmatprep.subr.bf16.mxu0 0
    %1021 = vmatpush1.bf16.msra.mxu0 0
    %1022 = vmatprep.subr.bf16.mxu0 0
    %1023 = vmatpush1.bf16.msra.mxu0 0
    %1024 = vmatprep.subr.bf16.mxu0 0
    %1025 = vmatpush1.bf16.msra.mxu0 0
    %1026 = vmatprep.subr.bf16.mxu0 0
    %1027 = vmatpush1.bf16.msra.mxu0 0
    %1028 = vmatprep.subr.bf16.mxu0 0
    %1029 = vmatpush1.bf16.msra.mxu0 0
    %1030 = vmatprep.subr.bf16.mxu0 0
    %1031 = vmatpush1.bf16.msra.mxu0 0
    %1032 = vmatprep.mubr.bf16.mxu0 0
    %1033 = vmatmul.mubr.bf16.gmra.mrb[0].mxu0 %v995
    %v1034 = vpop.f32.mrb[0].mxu0
    %v1035 = vadd.f32 0.0, %v1034
    %v1036 = vpop.f32.mrb[0].mxu0
    %v1037 = vpop.f32.mrb[0].mxu0
    %v1038 = vpop.f32.mrb[0].mxu0
    %1039 = vdwg.mxu0
    %1041 = vrot.lane.b32.xlu0 %v278, 96
    %v1042 = vpop.permute.xlu0 %1041
    %v1044 = vsel %vm280, %v743, 0
    %v1047 = vsel %vm751, %v1042, 0
    %1049 = vmatprep.subr.bf16.mxu0 0
    %1050 = vmatpush1.bf16.msra.mxu0 %v1047
    %1051 = vmatprep.subr.bf16.mxu0 0
    %1052 = vmatpush1.bf16.msra.mxu0 0
    %1053 = vmatprep.subr.bf16.mxu0 0
    %1054 = vmatpush1.bf16.msra.mxu0 0
    %1055 = vmatprep.subr.bf16.mxu0 0
    %1056 = vmatpush1.bf16.msra.mxu0 0
    %1057 = vmatprep.subr.bf16.mxu0 0
    %1058 = vmatpush1.bf16.msra.mxu0 0
    %1059 = vmatprep.subr.bf16.mxu0 0
    %1060 = vmatpush1.bf16.msra.mxu0 0
    %1061 = vmatprep.subr.bf16.mxu0 0
    %1062 = vmatpush1.bf16.msra.mxu0 0
    %1063 = vmatprep.subr.bf16.mxu0 0
    %1064 = vmatpush1.bf16.msra.mxu0 0
    %1065 = vmatprep.subr.bf16.mxu0 0
    %1066 = vmatpush1.bf16.msra.mxu0 0
    %1067 = vmatprep.subr.bf16.mxu0 0
    %1068 = vmatpush1.bf16.msra.mxu0 0
    %1069 = vmatprep.subr.bf16.mxu0 0
    %1070 = vmatpush1.bf16.msra.mxu0 0
    %1071 = vmatprep.subr.bf16.mxu0 0
    %1072 = vmatpush1.bf16.msra.mxu0 0
    %1073 = vmatprep.subr.bf16.mxu0 0
    %1074 = vmatpush1.bf16.msra.mxu0 0
    %1075 = vmatprep.subr.bf16.mxu0 0
    %1076 = vmatpush1.bf16.msra.mxu0 0
    %1077 = vmatprep.subr.bf16.mxu0 0
    %1078 = vmatpush1.bf16.msra.mxu0 0
    %1079 = vmatprep.subr.bf16.mxu0 0
    %1080 = vmatpush1.bf16.msra.mxu0 0
    %1081 = vmatprep.mubr.bf16.mxu0 0
    %1082 = vmatmul.mubr.bf16.gmra.mrb[0].mxu0 %v1044
    %v1083 = vpop.f32.mrb[0].mxu0
    %v1084 = vadd.f32 0.0, %v1083
    %v1085 = vpop.f32.mrb[0].mxu0
    %v1086 = vpop.f32.mrb[0].mxu0
    %v1087 = vpop.f32.mrb[0].mxu0
    %1088 = vdwg.mxu0
    %1090 = vrot.lane.b32.xlu0 %v279, 96
    %v1091 = vpop.permute.xlu0 %1090
    %v1093 = vsel %vm280, %v744, 0
    %v1096 = vsel %vm751, %v1091, 0
    %1098 = vmatprep.subr.bf16.mxu0 0
    %1099 = vmatpush1.bf16.msra.mxu0 %v1096
    %1100 = vmatprep.subr.bf16.mxu0 0
    %1101 = vmatpush1.bf16.msra.mxu0 0
    %1102 = vmatprep.subr.bf16.mxu0 0
    %1103 = vmatpush1.bf16.msra.mxu0 0
    %1104 = vmatprep.subr.bf16.mxu0 0
    %1105 = vmatpush1.bf16.msra.mxu0 0
    %1106 = vmatprep.subr.bf16.mxu0 0
    %1107 = vmatpush1.bf16.msra.mxu0 0
    %1108 = vmatprep.subr.bf16.mxu0 0
    %1109 = vmatpush1.bf16.msra.mxu0 0
    %1110 = vmatprep.subr.bf16.mxu0 0
    %1111 = vmatpush1.bf16.msra.mxu0 0
    %1112 = vmatprep.subr.bf16.mxu0 0
    %1113 = vmatpush1.bf16.msra.mxu0 0
    %1114 = vmatprep.subr.bf16.mxu0 0
    %1115 = vmatpush1.bf16.msra.mxu0 0
    %1116 = vmatprep.subr.bf16.mxu0 0
    %1117 = vmatpush1.bf16.msra.mxu0 0
    %1118 = vmatprep.subr.bf16.mxu0 0
    %1119 = vmatpush1.bf16.msra.mxu0 0
    %1120 = vmatprep.subr.bf16.mxu0 0
    %1121 = vmatpush1.bf16.msra.mxu0 0
    %1122 = vmatprep.subr.bf16.mxu0 0
    %1123 = vmatpush1.bf16.msra.mxu0 0
    %1124 = vmatprep.subr.bf16.mxu0 0
    %1125 = vmatpush1.bf16.msra.mxu0 0
    %1126 = vmatprep.subr.bf16.mxu0 0
    %1127 = vmatpush1.bf16.msra.mxu0 0
    %1128 = vmatprep.subr.bf16.mxu0 0
    %1129 = vmatpush1.bf16.msra.mxu0 0
    %1130 = vmatprep.mubr.bf16.mxu0 0
    %1131 = vmatmul.mubr.bf16.gmra.mrb[0].mxu0 %v1093
    %v1132 = vpop.f32.mrb[0].mxu0
    %v1133 = vadd.f32 0.0, %v1132
    %v1134 = vpop.f32.mrb[0].mxu0
    %v1135 = vpop.f32.mrb[0].mxu0
    %v1136 = vpop.f32.mrb[0].mxu0
    %1137 = vdwg.mxu0
    %v1138 = vpack.c.bf16 %v839, %v790
    %v1139 = vpack.c.bf16 %v937, %v888
    %v1140 = vpack.c.bf16 %v1035, %v986
    %v1141 = vpack.c.bf16 %v1133, %v1084
    %v1142 = vld [vmem:[#allocation7] sm:$0xf]
    %v1143 = vld [vmem:[#allocation7 + $0x4] sm:$0xf]
    %v1144 = vld [vmem:[#allocation7 + $0x8] sm:$0xf]
    %v1145 = vld [vmem:[#allocation7 + $0xc] sm:$0xf]
    %v1147 = vsel %vm280, %v1138, 0
    %v1150 = vsel %vm751, %v1142, 0
    %1152 = vmatprep.subr.bf16.mxu0 0
    %1153 = vmatpush1.bf16.msra.mxu0 %v1150
    %1154 = vmatprep.subr.bf16.mxu0 0
    %1155 = vmatpush1.bf16.msra.mxu0 0
    %1156 = vmatprep.subr.bf16.mxu0 0
    %1157 = vmatpush1.bf16.msra.mxu0 0
    %1158 = vmatprep.subr.bf16.mxu0 0
    %1159 = vmatpush1.bf16.msra.mxu0 0
    %1160 = vmatprep.subr.bf16.mxu0 0
    %1161 = vmatpush1.bf16.msra.mxu0 0
    %1162 = vmatprep.subr.bf16.mxu0 0
    %1163 = vmatpush1.bf16.msra.mxu0 0
    %1164 = vmatprep.subr.bf16.mxu0 0
    %1165 = vmatpush1.bf16.msra.mxu0 0
    %1166 = vmatprep.subr.bf16.mxu0 0
    %1167 = vmatpush1.bf16.msra.mxu0 0
    %1168 = vmatprep.subr.bf16.mxu0 0
    %1169 = vmatpush1.bf16.msra.mxu0 0
    %1170 = vmatprep.subr.bf16.mxu0 0
    %1171 = vmatpush1.bf16.msra.mxu0 0
    %1172 = vmatprep.subr.bf16.mxu0 0
    %1173 = vmatpush1.bf16.msra.mxu0 0
    %1174 = vmatprep.subr.bf16.mxu0 0
    %1175 = vmatpush1.bf16.msra.mxu0 0
    %1176 = vmatprep.subr.bf16.mxu0 0
    %1177 = vmatpush1.bf16.msra.mxu0 0
    %1178 = vmatprep.subr.bf16.mxu0 0
    %1179 = vmatpush1.bf16.msra.mxu0 0
    %1180 = vmatprep.subr.bf16.mxu0 0
    %1181 = vmatpush1.bf16.msra.mxu0 0
    %1182 = vmatprep.subr.bf16.mxu0 0
    %1183 = vmatpush1.bf16.msra.mxu0 0
    %1184 = vmatprep.mubr.bf16.mxu0 0
    %1185 = vmatmul.mubr.bf16.gmra.mrb[0].mxu0 %v1147
    %v1186 = vpop.f32.mrb[0].mxu0
    %v1187 = vadd.f32 0.0, %v1186
    %v1188 = vpop.f32.mrb[0].mxu0
    %v1189 = vpop.f32.mrb[0].mxu0
    %v1190 = vadd.f32 0.0, %v1189
    %v1191 = vpop.f32.mrb[0].mxu0
    %1192 = vdwg.mxu0
    %v1194 = vsel %vm280, %v1139, 0
    %v1197 = vsel %vm751, %v1143, 0
    %1199 = vmatprep.subr.bf16.mxu0 0
    %1200 = vmatpush1.bf16.msra.mxu0 %v1197
    %1201 = vmatprep.subr.bf16.mxu0 0
    %1202 = vmatpush1.bf16.msra.mxu0 0
    %1203 = vmatprep.subr.bf16.mxu0 0
    %1204 = vmatpush1.bf16.msra.mxu0 0
    %1205 = vmatprep.subr.bf16.mxu0 0
    %1206 = vmatpush1.bf16.msra.mxu0 0
    %1207 = vmatprep.subr.bf16.mxu0 0
    %1208 = vmatpush1.bf16.msra.mxu0 0
    %1209 = vmatprep.subr.bf16.mxu0 0
    %1210 = vmatpush1.bf16.msra.mxu0 0
    %1211 = vmatprep.subr.bf16.mxu0 0
    %1212 = vmatpush1.bf16.msra.mxu0 0
    %1213 = vmatprep.subr.bf16.mxu0 0
    %1214 = vmatpush1.bf16.msra.mxu0 0
    %1215 = vmatprep.subr.bf16.mxu0 0
    %1216 = vmatpush1.bf16.msra.mxu0 0
    %1217 = vmatprep.subr.bf16.mxu0 0
    %1218 = vmatpush1.bf16.msra.mxu0 0
    %1219 = vmatprep.subr.bf16.mxu0 0
    %1220 = vmatpush1.bf16.msra.mxu0 0
    %1221 = vmatprep.subr.bf16.mxu0 0
    %1222 = vmatpush1.bf16.msra.mxu0 0
    %1223 = vmatprep.subr.bf16.mxu0 0
    %1224 = vmatpush1.bf16.msra.mxu0 0
    %1225 = vmatprep.subr.bf16.mxu0 0
    %1226 = vmatpush1.bf16.msra.mxu0 0
    %1227 = vmatprep.subr.bf16.mxu0 0
    %1228 = vmatpush1.bf16.msra.mxu0 0
    %1229 = vmatprep.subr.bf16.mxu0 0
    %1230 = vmatpush1.bf16.msra.mxu0 0
    %1231 = vmatprep.mubr.bf16.mxu0 0
    %1232 = vmatmul.mubr.bf16.gmra.mrb[0].mxu0 %v1194
    %v1233 = vpop.f32.mrb[0].mxu0
    %v1234 = vadd.f32 0.0, %v1233
    %v1235 = vpop.f32.mrb[0].mxu0
    %v1236 = vpop.f32.mrb[0].mxu0
    %v1237 = vadd.f32 0.0, %v1236
    %v1238 = vpop.f32.mrb[0].mxu0
    %1239 = vdwg.mxu0
    %v1241 = vsel %vm280, %v1140, 0
    %v1244 = vsel %vm751, %v1144, 0
    %1246 = vmatprep.subr.bf16.mxu0 0
    %1247 = vmatpush1.bf16.msra.mxu0 %v1244
    %1248 = vmatprep.subr.bf16.mxu0 0
    %1249 = vmatpush1.bf16.msra.mxu0 0
    %1250 = vmatprep.subr.bf16.mxu0 0
    %1251 = vmatpush1.bf16.msra.mxu0 0
    %1252 = vmatprep.subr.bf16.mxu0 0
    %1253 = vmatpush1.bf16.msra.mxu0 0
    %1254 = vmatprep.subr.bf16.mxu0 0
    %1255 = vmatpush1.bf16.msra.mxu0 0
    %1256 = vmatprep.subr.bf16.mxu0 0
    %1257 = vmatpush1.bf16.msra.mxu0 0
    %1258 = vmatprep.subr.bf16.mxu0 0
    %1259 = vmatpush1.bf16.msra.mxu0 0
    %1260 = vmatprep.subr.bf16.mxu0 0
    %1261 = vmatpush1.bf16.msra.mxu0 0
    %1262 = vmatprep.subr.bf16.mxu0 0
    %1263 = vmatpush1.bf16.msra.mxu0 0
    %1264 = vmatprep.subr.bf16.mxu0 0
    %1265 = vmatpush1.bf16.msra.mxu0 0
    %1266 = vmatprep.subr.bf16.mxu0 0
    %1267 = vmatpush1.bf16.msra.mxu0 0
    %1268 = vmatprep.subr.bf16.mxu0 0
    %1269 = vmatpush1.bf16.msra.mxu0 0
    %1270 = vmatprep.subr.bf16.mxu0 0
    %1271 = vmatpush1.bf16.msra.mxu0 0
    %1272 = vmatprep.subr.bf16.mxu0 0
    %1273 = vmatpush1.bf16.msra.mxu0 0
    %1274 = vmatprep.subr.bf16.mxu0 0
    %1275 = vmatpush1.bf16.msra.mxu0 0
    %1276 = vmatprep.subr.bf16.mxu0 0
    %1277 = vmatpush1.bf16.msra.mxu0 0
    %1278 = vmatprep.mubr.bf16.mxu0 0
    %1279 = vmatmul.mubr.bf16.gmra.mrb[0].mxu0 %v1241
    %v1280 = vpop.f32.mrb[0].mxu0
    %v1281 = vadd.f32 0.0, %v1280
    %v1282 = vpop.f32.mrb[0].mxu0
    %v1283 = vpop.f32.mrb[0].mxu0
    %v1284 = vadd.f32 0.0, %v1283
    %v1285 = vpop.f32.mrb[0].mxu0
    %1286 = vdwg.mxu0
    %v1288 = vsel %vm280, %v1141, 0
    %v1291 = vsel %vm751, %v1145, 0
    %1293 = vmatprep.subr.bf16.mxu0 0
    %1294 = vmatpush1.bf16.msra.mxu0 %v1291
    %1295 = vmatprep.subr.bf16.mxu0 0
    %1296 = vmatpush1.bf16.msra.mxu0 0
    %1297 = vmatprep.subr.bf16.mxu0 0
    %1298 = vmatpush1.bf16.msra.mxu0 0
    %1299 = vmatprep.subr.bf16.mxu0 0
    %1300 = vmatpush1.bf16.msra.mxu0 0
    %1301 = vmatprep.subr.bf16.mxu0 0
    %1302 = vmatpush1.bf16.msra.mxu0 0
    %1303 = vmatprep.subr.bf16.mxu0 0
    %1304 = vmatpush1.bf16.msra.mxu0 0
    %1305 = vmatprep.subr.bf16.mxu0 0
    %1306 = vmatpush1.bf16.msra.mxu0 0
    %1307 = vmatprep.subr.bf16.mxu0 0
    %1308 = vmatpush1.bf16.msra.mxu0 0
    %1309 = vmatprep.subr.bf16.mxu0 0
    %1310 = vmatpush1.bf16.msra.mxu0 0
    %1311 = vmatprep.subr.bf16.mxu0 0
    %1312 = vmatpush1.bf16.msra.mxu0 0
    %1313 = vmatprep.subr.bf16.mxu0 0
    %1314 = vmatpush1.bf16.msra.mxu0 0
    %1315 = vmatprep.subr.bf16.mxu0 0
    %1316 = vmatpush1.bf16.msra.mxu0 0
    %1317 = vmatprep.subr.bf16.mxu0 0
    %1318 = vmatpush1.bf16.msra.mxu0 0
    %1319 = vmatprep.subr.bf16.mxu0 0
    %1320 = vmatpush1.bf16.msra.mxu0 0
    %1321 = vmatprep.subr.bf16.mxu0 0
    %1322 = vmatpush1.bf16.msra.mxu0 0
    %1323 = vmatprep.subr.bf16.mxu0 0
    %1324 = vmatpush1.bf16.msra.mxu0 0
    %1325 = vmatprep.mubr.bf16.mxu0 0
    %1326 = vmatmul.mubr.bf16.gmra.mrb[0].mxu0 %v1288
    %v1327 = vpop.f32.mrb[0].mxu0
    %v1328 = vadd.f32 0.0, %v1327
    %v1329 = vpop.f32.mrb[0].mxu0
    %v1330 = vpop.f32.mrb[0].mxu0
    %v1331 = vadd.f32 0.0, %v1330
    %v1332 = vpop.f32.mrb[0].mxu0
    %1333 = vdwg.mxu0
    %v1334 = vsel %vm114, %v1187, 0.0
    %v1335 = vsel %vm114, %v1234, 0.0
    %v1336 = vadd.f32 %v1334, %v1335
    %v1337 = vsel %vm114, %v1281, 0.0
    %v1338 = vadd.f32 %v1336, %v1337
    %v1339 = vsel %vm114, %v1328, 0.0
    %v1340 = vadd.f32 %v1338, %v1339
    %v1341 = vsel %vm114, %v1190, 0.0
    %v1342 = vsel %vm114, %v1237, 0.0
    %v1343 = vadd.f32 %v1341, %v1342
    %v1344 = vsel %vm114, %v1284, 0.0
    %v1345 = vadd.f32 %v1343, %v1344
    %v1346 = vsel %vm114, %v1331, 0.0
    %v1347 = vadd.f32 %v1345, %v1346
    %1349 = vrot.lane.b32.xlu0 %v101, 96
    %v1350 = vpop.permute.xlu0 %1349
    %v1352 = vadd.f32 %v1340, %v1350
    %v1353 = vadd.f32 %v1347, %v1350
    %v1354 = vadd.f32 %v88, %v1352
    %v1355 = vadd.f32 %v89, %v1353
    %v1356 = vsel %vm114, %v1354, 0.0
    %1357 = vadd.xlane.f32.xlu0 %v1356
    %v1358 = vpop.xlane.xlu0 %1357
    %v1359 = vsel %vm114, %v1355, 0.0
    %1360 = vadd.xlane.f32.xlu0 %v1359
    %v1361 = vpop.xlane.xlu0 %1360
    %v1362 = vrcp.pop 32.0
    %v1363 = vmul.f32 %v1358, %v1362
    %v1364 = vmul.f32 %v1361, %v1362
    %v1365 = vsub.f32 %v1354, %v1363
    %v1366 = vsub.f32 %v1355, %v1364
    %v1367 = vmul.f32 %v1365, %v1365
    %v1368 = vmul.f32 %v1366, %v1366
    %v1369 = vsel %vm114, %v1367, 0.0
    %1370 = vadd.xlane.f32.xlu0 %v1369
    %v1371 = vpop.xlane.xlu0 %1370
    %v1372 = vsel %vm114, %v1368, 0.0
    %1373 = vadd.xlane.f32.xlu0 %v1372
    %v1374 = vpop.xlane.xlu0 %1373
    %v1375 = vmul.f32 %v1371, %v1362
    %v1376 = vmul.f32 %v1374, %v1362
    %v1377 = vadd.f32 %v1375, 1e-05
    %v1378 = vadd.f32 %v1376, 1e-05
    %v1379 = vrsqrt.pop %v1377
    %v1380 = vrsqrt.pop %v1378
    %v1381 = vmul.f32 %v1365, %v1379
    %v1382 = vmul.f32 %v1366, %v1380
    %v1383 = vlaneseq
    %v1384 = vshrl.u32 %v1383, 7
    %v1385 = vsub.s32 4, %v1384
    %v1386 = vrot.slane %v87, %v1385
    %v1387 = vmul.f32 %v1381, %v1386
    %v1388 = vmul.f32 %v1382, %v1386
    %1390 = vrot.lane.b32.xlu0 %v1386, 96
    %v1391 = vpop.permute.xlu0 %1390
    %v1393 = vadd.f32 %v1387, %v1391
    %v1394 = vadd.f32 %v1388, %v1391
    %v1395 = vld [vmem:[#allocation8] sm:$0xf]
    %v1396 = vld [vmem:[#allocation8 + $0x4] sm:$0xf]
    %v1397 = vld [vmem:[#allocation8 + $0x8] sm:$0xf]
    %v1398 = vld [vmem:[#allocation8 + $0xc] sm:$0xf]
    %v1399 = vpack.c.bf16 %v1394, %v1393
    %v1400 = vlaneseq
    %v1401 = vshrl.u32 %v1400, 7
    %v1402 = vsub.s32 2, %v1401
    %v1403 = vrot.slane %v87, %v1402
    %v1408 = vunpack.c.l.b16 %v1395
    %v1409 = vunpack.c.l.b16 %v1396
    %v1410 = vunpack.c.l.b16 %v1397
    %v1411 = vunpack.c.l.b16 %v1398
    %v1412 = vpack.c.b16 %v1409, %v1408
    %v1413 = vpack.c.b16 %v1411, %v1410
    %v1417 = vsel %vm114, %v1399, 0
    %1419 = vmatprep.subr.bf16.mxu0 0
    %1420 = vmatpush1.bf16.msra.mxu0 %v1412
    %1421 = vmatprep.subr.bf16.mxu0 0
    %1422 = vmatpush1.bf16.msra.mxu0 %v1413
    %1423 = vmatprep.subr.bf16.mxu0 0
    %1424 = vmatpush1.bf16.msra.mxu0 0
    %1425 = vmatprep.subr.bf16.mxu0 0
    %1426 = vmatpush1.bf16.msra.mxu0 0
    %1427 = vmatprep.subr.bf16.mxu0 0
    %1428 = vmatpush1.bf16.msra.mxu0 0
    %1429 = vmatprep.subr.bf16.mxu0 0
    %1430 = vmatpush1.bf16.msra.mxu0 0
    %1431 = vmatprep.subr.bf16.mxu0 0
    %1432 = vmatpush1.bf16.msra.mxu0 0
    %1433 = vmatprep.subr.bf16.mxu0 0
    %1434 = vmatpush1.bf16.msra.mxu0 0
    %1435 = vmatprep.subr.bf16.mxu0 0
    %1436 = vmatpush1.bf16.msra.mxu0 0
    %1437 = vmatprep.subr.bf16.mxu0 0
    %1438 = vmatpush1.bf16.msra.mxu0 0
    %1439 = vmatprep.subr.bf16.mxu0 0
    %1440 = vmatpush1.bf16.msra.mxu0 0
    %1441 = vmatprep.subr.bf16.mxu0 0
    %1442 = vmatpush1.bf16.msra.mxu0 0
    %1443 = vmatprep.subr.bf16.mxu0 0
    %1444 = vmatpush1.bf16.msra.mxu0 0
    %1445 = vmatprep.subr.bf16.mxu0 0
    %1446 = vmatpush1.bf16.msra.mxu0 0
    %1447 = vmatprep.subr.bf16.mxu0 0
    %1448 = vmatpush1.bf16.msra.mxu0 0
    %1449 = vmatprep.subr.bf16.mxu0 0
    %1450 = vmatpush1.bf16.msra.mxu0 0
    %1451 = vmatprep.mubr.bf16.mxu0 0
    %1452 = vmatmul.mubr.bf16.gmra.mrb[0].mxu0 %v1417
    %v1453 = vpop.f32.mrb[0].mxu0
    %v1454 = vadd.f32 %v1403, %v1453
    %v1455 = vpop.f32.mrb[0].mxu0
    %v1456 = vpop.f32.mrb[0].mxu0
    %v1457 = vadd.f32 %v1403, %v1456
    %v1458 = vpop.f32.mrb[0].mxu0
    %1459 = vdwg.mxu0
    %v1460 = vmax.f32 %v1454, 0.0
    %v1461 = vmax.f32 %v1457, 0.0
    %v1462 = vld [vmem:[%s7] sm:$0xf]
    %v1463 = vld [vmem:[%s7 + $0x4] sm:$0xf]
    %v1464 = vld [vmem:[%s7 + $0x8] sm:$0xf]
    %v1465 = vld [vmem:[%s7 + $0xc] sm:$0xf]
    %v1466 = vld [vmem:[%s7 + $0x10] sm:$0xf]
    %v1467 = vld [vmem:[%s7 + $0x14] sm:$0xf]
    %v1468 = vld [vmem:[%s7 + $0x18] sm:$0xf]
    %v1469 = vld [vmem:[%s7 + $0x1c] sm:$0xf]
    %v1470 = vpack.c.bf16 %v1461, %v1460
    %v1471 = vlaneseq
    %v1472 = vshrl.u32 %v1471, 7
    %v1473 = vsub.s32 3, %v1472
    %v1474 = vrot.slane %v87, %v1473
    %v1483 = vunpack.c.l.b16 %v1462
    %v1484 = vunpack.c.l.b16 %v1463
    %v1485 = vunpack.c.l.b16 %v1464
    %v1486 = vunpack.c.l.b16 %v1465
    %v1487 = vunpack.c.l.b16 %v1466
    %v1488 = vunpack.c.l.b16 %v1467
    %v1489 = vunpack.c.l.b16 %v1468
    %v1490 = vunpack.c.l.b16 %v1469
    %v1491 = vpack.c.b16 %v1484, %v1483
    %v1492 = vpack.c.b16 %v1486, %v1485
    %v1493 = vpack.c.b16 %v1488, %v1487
    %v1494 = vpack.c.b16 %v1490, %v1489
    %vm1499 = vcmask 523264
    %v1501 = vsel %vm1499, %v1470, 0
    %1503 = vmatprep.subr.bf16.mxu0 0
    %1504 = vmatpush1.bf16.msra.mxu0 %v1491
    %1505 = vmatprep.subr.bf16.mxu0 0
    %1506 = vmatpush1.bf16.msra.mxu0 %v1492
    %1507 = vmatprep.subr.bf16.mxu0 0
    %1508 = vmatpush1.bf16.msra.mxu0 %v1493
    %1509 = vmatprep.subr.bf16.mxu0 0
    %1510 = vmatpush1.bf16.msra.mxu0 %v1494
    %1511 = vmatprep.subr.bf16.mxu0 0
    %1512 = vmatpush1.bf16.msra.mxu0 0
    %1513 = vmatprep.subr.bf16.mxu0 0
    %1514 = vmatpush1.bf16.msra.mxu0 0
    %1515 = vmatprep.subr.bf16.mxu0 0
    %1516 = vmatpush1.bf16.msra.mxu0 0
    %1517 = vmatprep.subr.bf16.mxu0 0
    %1518 = vmatpush1.bf16.msra.mxu0 0
    %1519 = vmatprep.subr.bf16.mxu0 0
    %1520 = vmatpush1.bf16.msra.mxu0 0
    %1521 = vmatprep.subr.bf16.mxu0 0
    %1522 = vmatpush1.bf16.msra.mxu0 0
    %1523 = vmatprep.subr.bf16.mxu0 0
    %1524 = vmatpush1.bf16.msra.mxu0 0
    %1525 = vmatprep.subr.bf16.mxu0 0
    %1526 = vmatpush1.bf16.msra.mxu0 0
    %1527 = vmatprep.subr.bf16.mxu0 0
    %1528 = vmatpush1.bf16.msra.mxu0 0
    %1529 = vmatprep.subr.bf16.mxu0 0
    %1530 = vmatpush1.bf16.msra.mxu0 0
    %1531 = vmatprep.subr.bf16.mxu0 0
    %1532 = vmatpush1.bf16.msra.mxu0 0
    %1533 = vmatprep.subr.bf16.mxu0 0
    %1534 = vmatpush1.bf16.msra.mxu0 0
    %1535 = vmatprep.mubr.bf16.mxu0 0
    %1536 = vmatmul.mubr.bf16.gmra.mrb[0].mxu0 %v1501
    %v1537 = vpop.f32.mrb[0].mxu0
    %v1538 = vadd.f32 %v1474, %v1537
    %v1539 = vpop.f32.mrb[0].mxu0
    %v1540 = vpop.f32.mrb[0].mxu0
    %v1541 = vadd.f32 %v1474, %v1540
    %v1542 = vpop.f32.mrb[0].mxu0
    %1543 = vdwg.mxu0
    %v1544 = vadd.f32 %v1393, %v1538
    %v1545 = vadd.f32 %v1394, %v1541
    %v1546 = vsel %vm114, %v1544, 0.0
    %1547 = vadd.xlane.f32.xlu0 %v1546
    %v1548 = vpop.xlane.xlu0 %1547
    %v1549 = vsel %vm114, %v1545, 0.0
    %1550 = vadd.xlane.f32.xlu0 %v1549
    %v1551 = vpop.xlane.xlu0 %1550
    %v1552 = vmul.f32 %v1548, %v1362
    %v1553 = vmul.f32 %v1551, %v1362
    %v1554 = vsub.f32 %v1544, %v1552
    %v1555 = vsub.f32 %v1545, %v1553
    %v1556 = vmul.f32 %v1554, %v1554
    %v1557 = vmul.f32 %v1555, %v1555
    %v1558 = vsel %vm114, %v1556, 0.0
    %1559 = vadd.xlane.f32.xlu0 %v1558
    %v1560 = vpop.xlane.xlu0 %1559
    %v1561 = vsel %vm114, %v1557, 0.0
    %1562 = vadd.xlane.f32.xlu0 %v1561
    %v1563 = vpop.xlane.xlu0 %1562
    %v1564 = vmul.f32 %v1560, %v1362
    %v1565 = vmul.f32 %v1563, %v1362
    %v1566 = vadd.f32 %v1564, 1e-05
    %v1567 = vadd.f32 %v1565, 1e-05
    %v1568 = vrsqrt.pop %v1566
    %v1569 = vrsqrt.pop %v1567
    %v1570 = vmul.f32 %v1554, %v1568
    %v1571 = vmul.f32 %v1555, %v1569
    %v1572 = vlaneseq
    %v1573 = vshrl.u32 %v1572, 7
    %v1574 = vsub.s32 5, %v1573
    %v1575 = vrot.slane %v87, %v1574
    %v1576 = vmul.f32 %v1570, %v1575
    %v1577 = vmul.f32 %v1571, %v1575
    %1579 = vrot.lane.b32.xlu0 %v1575, 96
    %v1580 = vpop.permute.xlu0 %1579
    %v1582 = vadd.f32 %v1576, %v1580
    %v1583 = vadd.f32 %v1577, %v1580
    %1584 = vst.msk [vmem:[#allocation10] sm:$0xff] %vm114, %v1582
    %1585 = vst.msk [vmem:[#allocation10 + $0x8] sm:$0xff] %vm114, %v1583
    // Predicated region
    $region54: #{tpu_custom_call.1} parent=1 // pred_check
      _
    $region55: #{tpu_custom_call.1} parent=1 // pred_check_branch
      %1587 = sbr.rel (0) target = $region57
    $region56: #{tpu_custom_call.1} parent=1 // pred_region
      %s1589 = ssub.s32 256, 256
      %1590 = vsyncadd [#allocation4], %s1589
      %s1591 = sshll.u32 [#allocation10], 4
      %s1592 = int_to_ptr.vmem [resolvable:$true] %s1591
      %1597 = dma.vmem_to_hbm [thread:$0]  %s1592, 256, %s9, [#allocation4], 128, 128, 8
    $region57: #{tpu_custom_call.1} parent=1 // pred_fallthru
      _
    // Predicated region
    $region58: #{tpu_custom_call.1} parent=1 // pred_check
      _
    $region59: #{tpu_custom_call.1} parent=1 // pred_check_branch
      %1599 = sbr.rel (0) target = $region61
    $region60: #{tpu_custom_call.1} parent=1 // pred_region
      %1600 = dma.done [#allocation4], 256
    $region61: #{tpu_custom_call.1} parent=1 // pred_fallthru
      _
    %1601 = vsyncpa [#allocation3], 1
    %1602 = vsyncpa [#allocation6], 1
    %1603 = vsyncpa [#allocation9], 1
    %1604 = vsyncpa [#allocation4], 1

</llo_original>
